<compile_context>
chip_gen: v6e
topology: v6e:2x2x1
jax: 0.10.0
libtpu: 0.0.40
codegen_flags: <defaults>
</compile_context>

<pallas_src>
import functools

import numpy as np
import jax
import jax.numpy as jnp
from jax.experimental import pallas as pl
from jax.experimental.pallas import tpu as pltpu

nc = 3
ndf = 8            # small synthetic stand-in for opt['ndf']
KSIZE = 4
STRIDE = 2
PAD = 1
BN_EPS = 1e-5
LRELU_SLOPE = 0.2


# --------------------------------------------------------------- static operators
def _row_select(n_batch, h_in, h_out):
    """R[kh, (n,i), (n,h)] = 1 iff h == STRIDE*i + kh - PAD.
    Out-of-range rows are simply absent, reproducing the conv's zero padding."""
    r = np.zeros((KSIZE, n_batch * h_out, n_batch * h_in), np.float32)
    for kh in range(KSIZE):
        for n in range(n_batch):
            for i in range(h_out):
                h = STRIDE * i + kh - PAD
                if 0 <= h < h_in:
                    r[kh, n * h_out + i, n * h_in + h] = 1.0
    return r


def _col_select(w_in, w_out):
    """Sel[kw, w, j] = 1 iff w == STRIDE*j + kw - PAD."""
    s = np.zeros((KSIZE, w_in, w_out), np.float32)
    for kw in range(KSIZE):
        for j in range(w_out):
            w = STRIDE * j + kw - PAD
            if 0 <= w < w_in:
                s[kw, w, j] = 1.0
    return s


def _chan_group(w_out, c_out):
    """S[(j,c), c'] = 1 iff c == c'   ((width, chan) columns -> channel groups)."""
    return np.tile(np.eye(c_out, dtype=np.float32), (w_out, 1))


def _fold_weights(w_oihw, sel):
    """Per-kh column operator M[kh] of shape (w_in*c_in, w_out*c_out): folds the kw
    taps, the width decimation and the cin->cout mixing of a PyTorch Conv2d weight
    (cout, cin, kh, kw) into a single matrix."""
    k, w_in, w_out = sel.shape
    c_out, c_in = w_oihw.shape[0], w_oihw.shape[1]
    wt = jnp.transpose(w_oihw, (2, 3, 1, 0))                  # (kh, kw, ci, co)
    m = jnp.einsum('kwj,hkio->hwijo', jnp.asarray(sel), wt)   # (kh, w_in, ci, w_out, co)
    return m.reshape(k, w_in * c_in, w_out * c_out)


# --------------------------------------------------------------- fused Pallas kernel
def _fused_enc_kernel(x_ref,
                      r1_ref, m1_ref, gb1_ref, s1_ref, t1_ref,
                      r2_ref, m2_ref, gb2_ref, s2_ref, t2_ref,
                      r3_ref, m3_ref,
                      o_ref, *, inv_counts):
    """Whole encoder in one VMEM-resident block.
    Activation layout: rows = (n, h), cols = (w, c)."""

    def conv(h_bf16, r_ref, m_ref):
        acc = None
        for kh in range(KSIZE):                      # static unroll, 4 taps
            t = jnp.dot(h_bf16, m_ref[kh], preferred_element_type=jnp.float32)
            t = jnp.dot(r_ref[kh], t.astype(jnp.bfloat16),
                        preferred_element_type=jnp.float32)
            acc = t if acc is None else acc + t
        return acc                                   # f32 (n*h_out, w_out*c_out)

    def bn_lrelu(y, gb_ref, s_ref, t_ref, inv_cnt):
        # training-mode BatchNorm with per-channel batch stats (two-pass variance)
        mean_c = jnp.dot(jnp.sum(y, axis=0, keepdims=True), s_ref[...],
                         preferred_element_type=jnp.float32) * inv_cnt   # (1, C)
        cen = y - jnp.dot(mean_c, t_ref[...], preferred_element_type=jnp.float32)
        var_c = jnp.dot(jnp.sum(cen * cen, axis=0, keepdims=True), s_ref[...],
                        preferred_element_type=jnp.float32) * inv_cnt    # (1, C)
        scale_c = gb_ref[0:1, :] * jax.lax.rsqrt(var_c + BN_EPS)
        z = (cen * jnp.dot(scale_c, t_ref[...], preferred_element_type=jnp.float32)
             + jnp.dot(gb_ref[1:2, :], t_ref[...],
                       preferred_element_type=jnp.float32))
        return jnp.where(z > 0, z, LRELU_SLOPE * z)

    h0 = x_ref[...]                                                      # bf16
    h1 = bn_lrelu(conv(h0, r1_ref, m1_ref),
                  gb1_ref, s1_ref, t1_ref, inv_counts[0]).astype(jnp.bfloat16)
    h2 = bn_lrelu(conv(h1, r2_ref, m2_ref),
                  gb2_ref, s2_ref, t2_ref, inv_counts[1]).astype(jnp.bfloat16)
    o_ref[...] = conv(h2, r3_ref, m3_ref)                                # f32 out


# --------------------------------------------------------------- model
def init_params(key):
    chans = [nc, ndf, ndf * 2, ndf * 4]
    keys = jax.random.split(key, 2 * (len(chans) - 1))
    weights, gammas, betas = [], [], []
    for i in range(len(chans) - 1):
        cin, cout = chans[i], chans[i + 1]
        w = 0.02 * jax.random.normal(keys[2 * i], (cout, cin, KSIZE, KSIZE),
                                     jnp.float32)
        weights.append(w)
        if i < len(chans) - 2:          # BN on all but the last conv
            g = 1.0 + 0.02 * jax.random.normal(keys[2 * i + 1], (cout,), jnp.float32)
            gammas.append(g)
            betas.append(jnp.zeros((cout,), jnp.float32))
    return {"w": weights, "gamma": gammas, "beta": betas}


def enc_forward(params, x_nchw):
    """Forward of `enc`: (N, nc, H, W) -> (N * ndf*4 * (H//8) * (W//8), 1)."""
    w1, w2, w3 = params["w"]
    n, _, h0, w0 = x_nchw.shape
    c1, c2, c3 = w1.shape[0], w2.shape[0], w3.shape[0]
    h1, h2, h3 = h0 // 2, h0 // 4, h0 // 8
    v1, v2, v3 = w0 // 2, w0 // 4, w0 // 8

    # 2D "(rows=(n,h), cols=(w,c))" layout of the input -- the only XLA glue on x.
    x2 = (jnp.transpose(x_nchw, (0, 2, 3, 1))
          .reshape(n * h0, w0 * nc).astype(jnp.bfloat16))

    # Static 0/1 selection operators (trace-time numpy constants).
    r1 = jnp.asarray(_row_select(n, h0, h1), jnp.bfloat16)
    r2 = jnp.asarray(_row_select(n, h1, h2), jnp.bfloat16)
    r3 = jnp.asarray(_row_select(n, h2, h3), jnp.bfloat16)
    g1 = _chan_group(v1, c1)
    g2 = _chan_group(v2, c2)
    s1, t1 = jnp.asarray(g1), jnp.asarray(g1.T)
    s2, t2 = jnp.asarray(g2), jnp.asarray(g2.T)

    # Weight-derived column operators (small einsums, once per call, wrapper-side).
    m1 = _fold_weights(w1, _col_select(w0, v1)).astype(jnp.bfloat16)
    m2 = _fold_weights(w2, _col_select(v1, v2)).astype(jnp.bfloat16)
    m3 = _fold_weights(w3, _col_select(v2, v3)).astype(jnp.bfloat16)

    gb1 = jnp.stack([params["gamma"][0], params["beta"][0]]).astype(jnp.float32)
    gb2 = jnp.stack([params["gamma"][1], params["beta"][1]]).astype(jnp.float32)

    inv_counts = (1.0 / float(n * h1 * v1), 1.0 / float(n * h2 * v2))

    # Advisory cost estimate for the XLA scheduler.
    flops = 0
    for rows_out, rows_in, cols_in, cols_out in (
            (n * h1, n * h0, w0 * nc, v1 * c1),
            (n * h2, n * h1, v1 * c1, v2 * c2),
            (n * h3, n * h2, v2 * c2, v3 * c3)):
        flops += 2 * KSIZE * (rows_in * cols_in * cols_out
                              + rows_out * rows_in * cols_out)
    args = (x2, r1, m1, gb1, s1, t1, r2, m2, gb2, s2, t2, r3, m3)
    bytes_accessed = (sum(a.size * a.dtype.itemsize for a in args)
                      + n * h3 * v3 * c3 * 4)

    kernel = functools.partial(_fused_enc_kernel, inv_counts=inv_counts)
    y3 = pl.pallas_call(
        kernel,
        out_shape=jax.ShapeDtypeStruct((n * h3, v3 * c3), jnp.float32),
        cost_estimate=pl.CostEstimate(flops=flops, transcendentals=c1 + c2,
                                      bytes_accessed=bytes_accessed),
        compiler_params=pltpu.CompilerParams(vmem_limit_bytes=16 * 1024 * 1024),
    )(*args)

    # rows=(n,i), cols=(j,co) -> NHWC -> NCHW -> .view(-1, 1)   (final tiny glue)
    out = jnp.transpose(y3.reshape(n, h3, v3, c3), (0, 3, 1, 2))
    return out.reshape(-1, 1)


# --------------------------------------------------------------- pure-JAX reference
def enc_reference(params, x_nchw):
    x = x_nchw
    n_layers = len(params["w"])
    for i in range(n_layers):
        x = jax.lax.conv_general_dilated(
            x, params["w"][i], window_strides=(STRIDE, STRIDE),
            padding=((PAD, PAD), (PAD, PAD)),
            dimension_numbers=("NCHW", "OIHW", "NCHW"))
        if i < n_layers - 1:
            mean = jnp.mean(x, axis=(0, 2, 3), keepdims=True)
            var = jnp.mean((x - mean) ** 2, axis=(0, 2, 3), keepdims=True)
            g = params["gamma"][i].reshape(1, -1, 1, 1)
            b = params["beta"][i].reshape(1, -1, 1, 1)
            x = g * (x - mean) * jax.lax.rsqrt(var + BN_EPS) + b
            x = jnp.where(x > 0, x, LRELU_SLOPE * x)
    return x.reshape(-1, 1)


# --------------------------------------------------------------- main
if __name__ == "__main__":
    key = jax.random.PRNGKey(0)
    pkey, xkey = jax.random.split(key)
    params = init_params(pkey)

    batch, image_size = 2, 16
    x = jax.random.normal(xkey, (batch, nc, image_size, image_size), jnp.float32)

    fwd = jax.jit(enc_forward)
    out = jax.block_until_ready(fwd(params, x))

    expected_rows = batch * (ndf * 4) * (image_size // 8) ** 2
    assert out.shape == (expected_rows, 1), out.shape
    assert out.dtype == jnp.float32
    assert bool(jnp.all(jnp.isfinite(out)))

    ref = enc_reference(params, x)
    err = float(jnp.max(jnp.abs(out - ref)))
    assert err < 1e-1, f"max abs err vs reference: {err}"

    print("KERNEL_OK")
</pallas_src>

<mosaic_0001>
module attributes {stable_mosaic.version = 11 : i64} {
  func.func @_fused_enc_kernel(%arg0: memref<32x48xbf16, #tpu.memory_space<vmem>>, %arg1: memref<4x16x32xbf16, #tpu.memory_space<vmem>>, %arg2: memref<4x48x64xbf16, #tpu.memory_space<vmem>>, %arg3: memref<2x8xf32, #tpu.memory_space<vmem>>, %arg4: memref<64x8xf32, #tpu.memory_space<vmem>>, %arg5: memref<8x64xf32, #tpu.memory_space<vmem>>, %arg6: memref<4x8x16xbf16, #tpu.memory_space<vmem>>, %arg7: memref<4x64x64xbf16, #tpu.memory_space<vmem>>, %arg8: memref<2x16xf32, #tpu.memory_space<vmem>>, %arg9: memref<64x16xf32, #tpu.memory_space<vmem>>, %arg10: memref<16x64xf32, #tpu.memory_space<vmem>>, %arg11: memref<4x4x8xbf16, #tpu.memory_space<vmem>>, %arg12: memref<4x64x64xbf16, #tpu.memory_space<vmem>>, %arg13: memref<4x64xf32, #tpu.memory_space<vmem>>) attributes {dimension_semantics = [], scalar_prefetch = 0 : i64, scratch_operands = 0 : i64, tpu.core_type = #tpu.core_type<tc>} {
    %c0 = arith.constant 0 : index
    %c0_0 = arith.constant 0 : index
    %0 = vector.load %arg0[%c0, %c0_0] : memref<32x48xbf16, #tpu.memory_space<vmem>>, vector<32x48xbf16>
    %c0_1 = arith.constant 0 : index
    %c0_2 = arith.constant 0 : index
    %c0_3 = arith.constant 0 : index
    %1 = vector.load %arg2[%c0_1, %c0_2, %c0_3] : memref<4x48x64xbf16, #tpu.memory_space<vmem>>, vector<1x48x64xbf16>
    %2 = vector.shape_cast %1 : vector<1x48x64xbf16> to vector<48x64xbf16>
    %cst = arith.constant dense<0.000000e+00> : vector<32x64xf32>
    %3 = tpu.matmul %0, %2, %cst {dimension_numbers = #tpu.dot_dimension_numbers<[1], [0], [0], [1], [0, 0, 1, 1], [], []>} : vector<32x48xbf16>, vector<48x64xbf16>, vector<32x64xf32> -> vector<32x64xf32>
    %c0_4 = arith.constant 0 : index
    %c0_5 = arith.constant 0 : index
    %c0_6 = arith.constant 0 : index
    %4 = vector.load %arg1[%c0_4, %c0_5, %c0_6] : memref<4x16x32xbf16, #tpu.memory_space<vmem>>, vector<1x16x32xbf16>
    %5 = vector.shape_cast %4 : vector<1x16x32xbf16> to vector<16x32xbf16>
    %6 = arith.truncf %3 : vector<32x64xf32> to vector<32x64xbf16>
    %cst_7 = arith.constant dense<0.000000e+00> : vector<16x64xf32>
    %7 = tpu.matmul %5, %6, %cst_7 {dimension_numbers = #tpu.dot_dimension_numbers<[1], [0], [0], [1], [0, 0, 1, 1], [], []>} : vector<16x32xbf16>, vector<32x64xbf16>, vector<16x64xf32> -> vector<16x64xf32>
    %c1 = arith.constant 1 : index
    %c0_8 = arith.constant 0 : index
    %c0_9 = arith.constant 0 : index
    %8 = vector.load %arg2[%c1, %c0_8, %c0_9] : memref<4x48x64xbf16, #tpu.memory_space<vmem>>, vector<1x48x64xbf16>
    %9 = vector.shape_cast %8 : vector<1x48x64xbf16> to vector<48x64xbf16>
    %cst_10 = arith.constant dense<0.000000e+00> : vector<32x64xf32>
    %10 = tpu.matmul %0, %9, %cst_10 {dimension_numbers = #tpu.dot_dimension_numbers<[1], [0], [0], [1], [0, 0, 1, 1], [], []>} : vector<32x48xbf16>, vector<48x64xbf16>, vector<32x64xf32> -> vector<32x64xf32>
    %c1_11 = arith.constant 1 : index
    %c0_12 = arith.constant 0 : index
    %c0_13 = arith.constant 0 : index
    %11 = vector.load %arg1[%c1_11, %c0_12, %c0_13] : memref<4x16x32xbf16, #tpu.memory_space<vmem>>, vector<1x16x32xbf16>
    %12 = vector.shape_cast %11 : vector<1x16x32xbf16> to vector<16x32xbf16>
    %13 = arith.truncf %10 : vector<32x64xf32> to vector<32x64xbf16>
    %cst_14 = arith.constant dense<0.000000e+00> : vector<16x64xf32>
    %14 = tpu.matmul %12, %13, %cst_14 {dimension_numbers = #tpu.dot_dimension_numbers<[1], [0], [0], [1], [0, 0, 1, 1], [], []>} : vector<16x32xbf16>, vector<32x64xbf16>, vector<16x64xf32> -> vector<16x64xf32>
    %15 = arith.addf %7, %14 : vector<16x64xf32>
    %c2 = arith.constant 2 : index
    %c0_15 = arith.constant 0 : index
    %c0_16 = arith.constant 0 : index
    %16 = vector.load %arg2[%c2, %c0_15, %c0_16] : memref<4x48x64xbf16, #tpu.memory_space<vmem>>, vector<1x48x64xbf16>
    %17 = vector.shape_cast %16 : vector<1x48x64xbf16> to vector<48x64xbf16>
    %cst_17 = arith.constant dense<0.000000e+00> : vector<32x64xf32>
    %18 = tpu.matmul %0, %17, %cst_17 {dimension_numbers = #tpu.dot_dimension_numbers<[1], [0], [0], [1], [0, 0, 1, 1], [], []>} : vector<32x48xbf16>, vector<48x64xbf16>, vector<32x64xf32> -> vector<32x64xf32>
    %c2_18 = arith.constant 2 : index
    %c0_19 = arith.constant 0 : index
    %c0_20 = arith.constant 0 : index
    %19 = vector.load %arg1[%c2_18, %c0_19, %c0_20] : memref<4x16x32xbf16, #tpu.memory_space<vmem>>, vector<1x16x32xbf16>
    %20 = vector.shape_cast %19 : vector<1x16x32xbf16> to vector<16x32xbf16>
    %21 = arith.truncf %18 : vector<32x64xf32> to vector<32x64xbf16>
    %cst_21 = arith.constant dense<0.000000e+00> : vector<16x64xf32>
    %22 = tpu.matmul %20, %21, %cst_21 {dimension_numbers = #tpu.dot_dimension_numbers<[1], [0], [0], [1], [0, 0, 1, 1], [], []>} : vector<16x32xbf16>, vector<32x64xbf16>, vector<16x64xf32> -> vector<16x64xf32>
    %23 = arith.addf %15, %22 : vector<16x64xf32>
    %c3 = arith.constant 3 : index
    %c0_22 = arith.constant 0 : index
    %c0_23 = arith.constant 0 : index
    %24 = vector.load %arg2[%c3, %c0_22, %c0_23] : memref<4x48x64xbf16, #tpu.memory_space<vmem>>, vector<1x48x64xbf16>
    %25 = vector.shape_cast %24 : vector<1x48x64xbf16> to vector<48x64xbf16>
    %cst_24 = arith.constant dense<0.000000e+00> : vector<32x64xf32>
    %26 = tpu.matmul %0, %25, %cst_24 {dimension_numbers = #tpu.dot_dimension_numbers<[1], [0], [0], [1], [0, 0, 1, 1], [], []>} : vector<32x48xbf16>, vector<48x64xbf16>, vector<32x64xf32> -> vector<32x64xf32>
    %c3_25 = arith.constant 3 : index
    %c0_26 = arith.constant 0 : index
    %c0_27 = arith.constant 0 : index
    %27 = vector.load %arg1[%c3_25, %c0_26, %c0_27] : memref<4x16x32xbf16, #tpu.memory_space<vmem>>, vector<1x16x32xbf16>
    %28 = vector.shape_cast %27 : vector<1x16x32xbf16> to vector<16x32xbf16>
    %29 = arith.truncf %26 : vector<32x64xf32> to vector<32x64xbf16>
    %cst_28 = arith.constant dense<0.000000e+00> : vector<16x64xf32>
    %30 = tpu.matmul %28, %29, %cst_28 {dimension_numbers = #tpu.dot_dimension_numbers<[1], [0], [0], [1], [0, 0, 1, 1], [], []>} : vector<16x32xbf16>, vector<32x64xbf16>, vector<16x64xf32> -> vector<16x64xf32>
    %31 = arith.addf %23, %30 : vector<16x64xf32>
    %cst_29 = arith.constant dense<0.000000e+00> : vector<64xf32>
    %32 = vector.multi_reduction <add>, %31, %cst_29 [0] : vector<16x64xf32> to vector<64xf32>
    %33 = vector.shape_cast %32 : vector<64xf32> to vector<1x64xf32>
    %c0_30 = arith.constant 0 : index
    %c0_31 = arith.constant 0 : index
    %34 = vector.load %arg4[%c0_30, %c0_31] : memref<64x8xf32, #tpu.memory_space<vmem>>, vector<64x8xf32>
    %cst_32 = arith.constant dense<0.000000e+00> : vector<1x8xf32>
    %35 = tpu.matmul %33, %34, %cst_32 {dimension_numbers = #tpu.dot_dimension_numbers<[1], [0], [0], [1], [0, 0, 1, 1], [], []>} : vector<1x64xf32>, vector<64x8xf32>, vector<1x8xf32> -> vector<1x8xf32>
    %cst_33 = arith.constant 7.812500e-03 : f32
    %36 = vector.broadcast %cst_33 : f32 to vector<1x8xf32>
    %37 = arith.mulf %35, %36 : vector<1x8xf32>
    %c0_34 = arith.constant 0 : index
    %c0_35 = arith.constant 0 : index
    %38 = vector.load %arg5[%c0_34, %c0_35] : memref<8x64xf32, #tpu.memory_space<vmem>>, vector<8x64xf32>
    %cst_36 = arith.constant dense<0.000000e+00> : vector<1x64xf32>
    %39 = tpu.matmul %37, %38, %cst_36 {dimension_numbers = #tpu.dot_dimension_numbers<[1], [0], [0], [1], [0, 0, 1, 1], [], []>} : vector<1x8xf32>, vector<8x64xf32>, vector<1x64xf32> -> vector<1x64xf32>
    %40 = vector.broadcast %39 : vector<1x64xf32> to vector<16x64xf32>
    %41 = arith.subf %31, %40 : vector<16x64xf32>
    %42 = arith.mulf %41, %41 : vector<16x64xf32>
    %cst_37 = arith.constant dense<0.000000e+00> : vector<64xf32>
    %43 = vector.multi_reduction <add>, %42, %cst_37 [0] : vector<16x64xf32> to vector<64xf32>
    %44 = vector.shape_cast %43 : vector<64xf32> to vector<1x64xf32>
    %c0_38 = arith.constant 0 : index
    %c0_39 = arith.constant 0 : index
    %45 = vector.load %arg4[%c0_38, %c0_39] : memref<64x8xf32, #tpu.memory_space<vmem>>, vector<64x8xf32>
    %cst_40 = arith.constant dense<0.000000e+00> : vector<1x8xf32>
    %46 = tpu.matmul %44, %45, %cst_40 {dimension_numbers = #tpu.dot_dimension_numbers<[1], [0], [0], [1], [0, 0, 1, 1], [], []>} : vector<1x64xf32>, vector<64x8xf32>, vector<1x8xf32> -> vector<1x8xf32>
    %cst_41 = arith.constant 7.812500e-03 : f32
    %47 = vector.broadcast %cst_41 : f32 to vector<1x8xf32>
    %48 = arith.mulf %46, %47 : vector<1x8xf32>
    %c0_42 = arith.constant 0 : index
    %c0_43 = arith.constant 0 : index
    %49 = vector.load %arg3[%c0_42, %c0_43] : memref<2x8xf32, #tpu.memory_space<vmem>>, vector<1x8xf32>
    %cst_44 = arith.constant 9.99999974E-6 : f32
    %50 = vector.broadcast %cst_44 : f32 to vector<1x8xf32>
    %51 = arith.addf %48, %50 : vector<1x8xf32>
    %52 = math.rsqrt %51 : vector<1x8xf32>
    %53 = arith.mulf %49, %52 : vector<1x8xf32>
    %c0_45 = arith.constant 0 : index
    %c0_46 = arith.constant 0 : index
    %54 = vector.load %arg5[%c0_45, %c0_46] : memref<8x64xf32, #tpu.memory_space<vmem>>, vector<8x64xf32>
    %cst_47 = arith.constant dense<0.000000e+00> : vector<1x64xf32>
    %55 = tpu.matmul %53, %54, %cst_47 {dimension_numbers = #tpu.dot_dimension_numbers<[1], [0], [0], [1], [0, 0, 1, 1], [], []>} : vector<1x8xf32>, vector<8x64xf32>, vector<1x64xf32> -> vector<1x64xf32>
    %56 = vector.broadcast %55 : vector<1x64xf32> to vector<16x64xf32>
    %57 = arith.mulf %41, %56 : vector<16x64xf32>
    %c1_48 = arith.constant 1 : index
    %c0_49 = arith.constant 0 : index
    %58 = vector.load %arg3[%c1_48, %c0_49] : memref<2x8xf32, #tpu.memory_space<vmem>>, vector<1x8xf32>
    %c0_50 = arith.constant 0 : index
    %c0_51 = arith.constant 0 : index
    %59 = vector.load %arg5[%c0_50, %c0_51] : memref<8x64xf32, #tpu.memory_space<vmem>>, vector<8x64xf32>
    %cst_52 = arith.constant dense<0.000000e+00> : vector<1x64xf32>
    %60 = tpu.matmul %58, %59, %cst_52 {dimension_numbers = #tpu.dot_dimension_numbers<[1], [0], [0], [1], [0, 0, 1, 1], [], []>} : vector<1x8xf32>, vector<8x64xf32>, vector<1x64xf32> -> vector<1x64xf32>
    %61 = vector.broadcast %60 : vector<1x64xf32> to vector<16x64xf32>
    %62 = arith.addf %57, %61 : vector<16x64xf32>
    %cst_53 = arith.constant 0.000000e+00 : f32
    %63 = vector.broadcast %cst_53 : f32 to vector<16x64xf32>
    %64 = arith.cmpf ogt, %62, %63 : vector<16x64xf32>
    %cst_54 = arith.constant 2.000000e-01 : f32
    %65 = vector.broadcast %cst_54 : f32 to vector<16x64xf32>
    %66 = arith.mulf %65, %62 : vector<16x64xf32>
    %67 = arith.select %64, %62, %66 : vector<16x64xi1>, vector<16x64xf32>
    %68 = arith.truncf %67 : vector<16x64xf32> to vector<16x64xbf16>
    %c0_55 = arith.constant 0 : index
    %c0_56 = arith.constant 0 : index
    %c0_57 = arith.constant 0 : index
    %69 = vector.load %arg7[%c0_55, %c0_56, %c0_57] : memref<4x64x64xbf16, #tpu.memory_space<vmem>>, vector<1x64x64xbf16>
    %70 = vector.shape_cast %69 : vector<1x64x64xbf16> to vector<64x64xbf16>
    %cst_58 = arith.constant dense<0.000000e+00> : vector<16x64xf32>
    %71 = tpu.matmul %68, %70, %cst_58 {dimension_numbers = #tpu.dot_dimension_numbers<[1], [0], [0], [1], [0, 0, 1, 1], [], []>} : vector<16x64xbf16>, vector<64x64xbf16>, vector<16x64xf32> -> vector<16x64xf32>
    %c0_59 = arith.constant 0 : index
    %c0_60 = arith.constant 0 : index
    %c0_61 = arith.constant 0 : index
    %72 = vector.load %arg6[%c0_59, %c0_60, %c0_61] : memref<4x8x16xbf16, #tpu.memory_space<vmem>>, vector<1x8x16xbf16>
    %73 = vector.shape_cast %72 : vector<1x8x16xbf16> to vector<8x16xbf16>
    %74 = arith.truncf %71 : vector<16x64xf32> to vector<16x64xbf16>
    %cst_62 = arith.constant dense<0.000000e+00> : vector<8x64xf32>
    %75 = tpu.matmul %73, %74, %cst_62 {dimension_numbers = #tpu.dot_dimension_numbers<[1], [0], [0], [1], [0, 0, 1, 1], [], []>} : vector<8x16xbf16>, vector<16x64xbf16>, vector<8x64xf32> -> vector<8x64xf32>
    %c1_63 = arith.constant 1 : index
    %c0_64 = arith.constant 0 : index
    %c0_65 = arith.constant 0 : index
    %76 = vector.load %arg7[%c1_63, %c0_64, %c0_65] : memref<4x64x64xbf16, #tpu.memory_space<vmem>>, vector<1x64x64xbf16>
    %77 = vector.shape_cast %76 : vector<1x64x64xbf16> to vector<64x64xbf16>
    %cst_66 = arith.constant dense<0.000000e+00> : vector<16x64xf32>
    %78 = tpu.matmul %68, %77, %cst_66 {dimension_numbers = #tpu.dot_dimension_numbers<[1], [0], [0], [1], [0, 0, 1, 1], [], []>} : vector<16x64xbf16>, vector<64x64xbf16>, vector<16x64xf32> -> vector<16x64xf32>
    %c1_67 = arith.constant 1 : index
    %c0_68 = arith.constant 0 : index
    %c0_69 = arith.constant 0 : index
    %79 = vector.load %arg6[%c1_67, %c0_68, %c0_69] : memref<4x8x16xbf16, #tpu.memory_space<vmem>>, vector<1x8x16xbf16>
    %80 = vector.shape_cast %79 : vector<1x8x16xbf16> to vector<8x16xbf16>
    %81 = arith.truncf %78 : vector<16x64xf32> to vector<16x64xbf16>
    %cst_70 = arith.constant dense<0.000000e+00> : vector<8x64xf32>
    %82 = tpu.matmul %80, %81, %cst_70 {dimension_numbers = #tpu.dot_dimension_numbers<[1], [0], [0], [1], [0, 0, 1, 1], [], []>} : vector<8x16xbf16>, vector<16x64xbf16>, vector<8x64xf32> -> vector<8x64xf32>
    %83 = arith.addf %75, %82 : vector<8x64xf32>
    %c2_71 = arith.constant 2 : index
    %c0_72 = arith.constant 0 : index
    %c0_73 = arith.constant 0 : index
    %84 = vector.load %arg7[%c2_71, %c0_72, %c0_73] : memref<4x64x64xbf16, #tpu.memory_space<vmem>>, vector<1x64x64xbf16>
    %85 = vector.shape_cast %84 : vector<1x64x64xbf16> to vector<64x64xbf16>
    %cst_74 = arith.constant dense<0.000000e+00> : vector<16x64xf32>
    %86 = tpu.matmul %68, %85, %cst_74 {dimension_numbers = #tpu.dot_dimension_numbers<[1], [0], [0], [1], [0, 0, 1, 1], [], []>} : vector<16x64xbf16>, vector<64x64xbf16>, vector<16x64xf32> -> vector<16x64xf32>
    %c2_75 = arith.constant 2 : index
    %c0_76 = arith.constant 0 : index
    %c0_77 = arith.constant 0 : index
    %87 = vector.load %arg6[%c2_75, %c0_76, %c0_77] : memref<4x8x16xbf16, #tpu.memory_space<vmem>>, vector<1x8x16xbf16>
    %88 = vector.shape_cast %87 : vector<1x8x16xbf16> to vector<8x16xbf16>
    %89 = arith.truncf %86 : vector<16x64xf32> to vector<16x64xbf16>
    %cst_78 = arith.constant dense<0.000000e+00> : vector<8x64xf32>
    %90 = tpu.matmul %88, %89, %cst_78 {dimension_numbers = #tpu.dot_dimension_numbers<[1], [0], [0], [1], [0, 0, 1, 1], [], []>} : vector<8x16xbf16>, vector<16x64xbf16>, vector<8x64xf32> -> vector<8x64xf32>
    %91 = arith.addf %83, %90 : vector<8x64xf32>
    %c3_79 = arith.constant 3 : index
    %c0_80 = arith.constant 0 : index
    %c0_81 = arith.constant 0 : index
    %92 = vector.load %arg7[%c3_79, %c0_80, %c0_81] : memref<4x64x64xbf16, #tpu.memory_space<vmem>>, vector<1x64x64xbf16>
    %93 = vector.shape_cast %92 : vector<1x64x64xbf16> to vector<64x64xbf16>
    %cst_82 = arith.constant dense<0.000000e+00> : vector<16x64xf32>
    %94 = tpu.matmul %68, %93, %cst_82 {dimension_numbers = #tpu.dot_dimension_numbers<[1], [0], [0], [1], [0, 0, 1, 1], [], []>} : vector<16x64xbf16>, vector<64x64xbf16>, vector<16x64xf32> -> vector<16x64xf32>
    %c3_83 = arith.constant 3 : index
    %c0_84 = arith.constant 0 : index
    %c0_85 = arith.constant 0 : index
    %95 = vector.load %arg6[%c3_83, %c0_84, %c0_85] : memref<4x8x16xbf16, #tpu.memory_space<vmem>>, vector<1x8x16xbf16>
    %96 = vector.shape_cast %95 : vector<1x8x16xbf16> to vector<8x16xbf16>
    %97 = arith.truncf %94 : vector<16x64xf32> to vector<16x64xbf16>
    %cst_86 = arith.constant dense<0.000000e+00> : vector<8x64xf32>
    %98 = tpu.matmul %96, %97, %cst_86 {dimension_numbers = #tpu.dot_dimension_numbers<[1], [0], [0], [1], [0, 0, 1, 1], [], []>} : vector<8x16xbf16>, vector<16x64xbf16>, vector<8x64xf32> -> vector<8x64xf32>
    %99 = arith.addf %91, %98 : vector<8x64xf32>
    %cst_87 = arith.constant dense<0.000000e+00> : vector<64xf32>
    %100 = vector.multi_reduction <add>, %99, %cst_87 [0] : vector<8x64xf32> to vector<64xf32>
    %101 = vector.shape_cast %100 : vector<64xf32> to vector<1x64xf32>
    %c0_88 = arith.constant 0 : index
    %c0_89 = arith.constant 0 : index
    %102 = vector.load %arg9[%c0_88, %c0_89] : memref<64x16xf32, #tpu.memory_space<vmem>>, vector<64x16xf32>
    %cst_90 = arith.constant dense<0.000000e+00> : vector<1x16xf32>
    %103 = tpu.matmul %101, %102, %cst_90 {dimension_numbers = #tpu.dot_dimension_numbers<[1], [0], [0], [1], [0, 0, 1, 1], [], []>} : vector<1x64xf32>, vector<64x16xf32>, vector<1x16xf32> -> vector<1x16xf32>
    %cst_91 = arith.constant 3.125000e-02 : f32
    %104 = vector.broadcast %cst_91 : f32 to vector<1x16xf32>
    %105 = arith.mulf %103, %104 : vector<1x16xf32>
    %c0_92 = arith.constant 0 : index
    %c0_93 = arith.constant 0 : index
    %106 = vector.load %arg10[%c0_92, %c0_93] : memref<16x64xf32, #tpu.memory_space<vmem>>, vector<16x64xf32>
    %cst_94 = arith.constant dense<0.000000e+00> : vector<1x64xf32>
    %107 = tpu.matmul %105, %106, %cst_94 {dimension_numbers = #tpu.dot_dimension_numbers<[1], [0], [0], [1], [0, 0, 1, 1], [], []>} : vector<1x16xf32>, vector<16x64xf32>, vector<1x64xf32> -> vector<1x64xf32>
    %108 = vector.broadcast %107 : vector<1x64xf32> to vector<8x64xf32>
    %109 = arith.subf %99, %108 : vector<8x64xf32>
    %110 = arith.mulf %109, %109 : vector<8x64xf32>
    %cst_95 = arith.constant dense<0.000000e+00> : vector<64xf32>
    %111 = vector.multi_reduction <add>, %110, %cst_95 [0] : vector<8x64xf32> to vector<64xf32>
    %112 = vector.shape_cast %111 : vector<64xf32> to vector<1x64xf32>
    %c0_96 = arith.constant 0 : index
    %c0_97 = arith.constant 0 : index
    %113 = vector.load %arg9[%c0_96, %c0_97] : memref<64x16xf32, #tpu.memory_space<vmem>>, vector<64x16xf32>
    %cst_98 = arith.constant dense<0.000000e+00> : vector<1x16xf32>
    %114 = tpu.matmul %112, %113, %cst_98 {dimension_numbers = #tpu.dot_dimension_numbers<[1], [0], [0], [1], [0, 0, 1, 1], [], []>} : vector<1x64xf32>, vector<64x16xf32>, vector<1x16xf32> -> vector<1x16xf32>
    %cst_99 = arith.constant 3.125000e-02 : f32
    %115 = vector.broadcast %cst_99 : f32 to vector<1x16xf32>
    %116 = arith.mulf %114, %115 : vector<1x16xf32>
    %c0_100 = arith.constant 0 : index
    %c0_101 = arith.constant 0 : index
    %117 = vector.load %arg8[%c0_100, %c0_101] : memref<2x16xf32, #tpu.memory_space<vmem>>, vector<1x16xf32>
    %cst_102 = arith.constant 9.99999974E-6 : f32
    %118 = vector.broadcast %cst_102 : f32 to vector<1x16xf32>
    %119 = arith.addf %116, %118 : vector<1x16xf32>
    %120 = math.rsqrt %119 : vector<1x16xf32>
    %121 = arith.mulf %117, %120 : vector<1x16xf32>
    %c0_103 = arith.constant 0 : index
    %c0_104 = arith.constant 0 : index
    %122 = vector.load %arg10[%c0_103, %c0_104] : memref<16x64xf32, #tpu.memory_space<vmem>>, vector<16x64xf32>
    %cst_105 = arith.constant dense<0.000000e+00> : vector<1x64xf32>
    %123 = tpu.matmul %121, %122, %cst_105 {dimension_numbers = #tpu.dot_dimension_numbers<[1], [0], [0], [1], [0, 0, 1, 1], [], []>} : vector<1x16xf32>, vector<16x64xf32>, vector<1x64xf32> -> vector<1x64xf32>
    %124 = vector.broadcast %123 : vector<1x64xf32> to vector<8x64xf32>
    %125 = arith.mulf %109, %124 : vector<8x64xf32>
    %c1_106 = arith.constant 1 : index
    %c0_107 = arith.constant 0 : index
    %126 = vector.load %arg8[%c1_106, %c0_107] : memref<2x16xf32, #tpu.memory_space<vmem>>, vector<1x16xf32>
    %c0_108 = arith.constant 0 : index
    %c0_109 = arith.constant 0 : index
    %127 = vector.load %arg10[%c0_108, %c0_109] : memref<16x64xf32, #tpu.memory_space<vmem>>, vector<16x64xf32>
    %cst_110 = arith.constant dense<0.000000e+00> : vector<1x64xf32>
    %128 = tpu.matmul %126, %127, %cst_110 {dimension_numbers = #tpu.dot_dimension_numbers<[1], [0], [0], [1], [0, 0, 1, 1], [], []>} : vector<1x16xf32>, vector<16x64xf32>, vector<1x64xf32> -> vector<1x64xf32>
    %129 = vector.broadcast %128 : vector<1x64xf32> to vector<8x64xf32>
    %130 = arith.addf %125, %129 : vector<8x64xf32>
    %cst_111 = arith.constant 0.000000e+00 : f32
    %131 = vector.broadcast %cst_111 : f32 to vector<8x64xf32>
    %132 = arith.cmpf ogt, %130, %131 : vector<8x64xf32>
    %cst_112 = arith.constant 2.000000e-01 : f32
    %133 = vector.broadcast %cst_112 : f32 to vector<8x64xf32>
    %134 = arith.mulf %133, %130 : vector<8x64xf32>
    %135 = arith.select %132, %130, %134 : vector<8x64xi1>, vector<8x64xf32>
    %136 = arith.truncf %135 : vector<8x64xf32> to vector<8x64xbf16>
    %c0_113 = arith.constant 0 : index
    %c0_114 = arith.constant 0 : index
    %c0_115 = arith.constant 0 : index
    %137 = vector.load %arg12[%c0_113, %c0_114, %c0_115] : memref<4x64x64xbf16, #tpu.memory_space<vmem>>, vector<1x64x64xbf16>
    %138 = vector.shape_cast %137 : vector<1x64x64xbf16> to vector<64x64xbf16>
    %cst_116 = arith.constant dense<0.000000e+00> : vector<8x64xf32>
    %139 = tpu.matmul %136, %138, %cst_116 {dimension_numbers = #tpu.dot_dimension_numbers<[1], [0], [0], [1], [0, 0, 1, 1], [], []>} : vector<8x64xbf16>, vector<64x64xbf16>, vector<8x64xf32> -> vector<8x64xf32>
    %c0_117 = arith.constant 0 : index
    %c0_118 = arith.constant 0 : index
    %c0_119 = arith.constant 0 : index
    %140 = vector.load %arg11[%c0_117, %c0_118, %c0_119] : memref<4x4x8xbf16, #tpu.memory_space<vmem>>, vector<1x4x8xbf16>
    %141 = vector.shape_cast %140 : vector<1x4x8xbf16> to vector<4x8xbf16>
    %142 = arith.truncf %139 : vector<8x64xf32> to vector<8x64xbf16>
    %cst_120 = arith.constant dense<0.000000e+00> : vector<4x64xf32>
    %143 = tpu.matmul %141, %142, %cst_120 {dimension_numbers = #tpu.dot_dimension_numbers<[1], [0], [0], [1], [0, 0, 1, 1], [], []>} : vector<4x8xbf16>, vector<8x64xbf16>, vector<4x64xf32> -> vector<4x64xf32>
    %c1_121 = arith.constant 1 : index
    %c0_122 = arith.constant 0 : index
    %c0_123 = arith.constant 0 : index
    %144 = vector.load %arg12[%c1_121, %c0_122, %c0_123] : memref<4x64x64xbf16, #tpu.memory_space<vmem>>, vector<1x64x64xbf16>
    %145 = vector.shape_cast %144 : vector<1x64x64xbf16> to vector<64x64xbf16>
    %cst_124 = arith.constant dense<0.000000e+00> : vector<8x64xf32>
    %146 = tpu.matmul %136, %145, %cst_124 {dimension_numbers = #tpu.dot_dimension_numbers<[1], [0], [0], [1], [0, 0, 1, 1], [], []>} : vector<8x64xbf16>, vector<64x64xbf16>, vector<8x64xf32> -> vector<8x64xf32>
    %c1_125 = arith.constant 1 : index
    %c0_126 = arith.constant 0 : index
    %c0_127 = arith.constant 0 : index
    %147 = vector.load %arg11[%c1_125, %c0_126, %c0_127] : memref<4x4x8xbf16, #tpu.memory_space<vmem>>, vector<1x4x8xbf16>
    %148 = vector.shape_cast %147 : vector<1x4x8xbf16> to vector<4x8xbf16>
    %149 = arith.truncf %146 : vector<8x64xf32> to vector<8x64xbf16>
    %cst_128 = arith.constant dense<0.000000e+00> : vector<4x64xf32>
    %150 = tpu.matmul %148, %149, %cst_128 {dimension_numbers = #tpu.dot_dimension_numbers<[1], [0], [0], [1], [0, 0, 1, 1], [], []>} : vector<4x8xbf16>, vector<8x64xbf16>, vector<4x64xf32> -> vector<4x64xf32>
    %151 = arith.addf %143, %150 : vector<4x64xf32>
    %c2_129 = arith.constant 2 : index
    %c0_130 = arith.constant 0 : index
    %c0_131 = arith.constant 0 : index
    %152 = vector.load %arg12[%c2_129, %c0_130, %c0_131] : memref<4x64x64xbf16, #tpu.memory_space<vmem>>, vector<1x64x64xbf16>
    %153 = vector.shape_cast %152 : vector<1x64x64xbf16> to vector<64x64xbf16>
    %cst_132 = arith.constant dense<0.000000e+00> : vector<8x64xf32>
    %154 = tpu.matmul %136, %153, %cst_132 {dimension_numbers = #tpu.dot_dimension_numbers<[1], [0], [0], [1], [0, 0, 1, 1], [], []>} : vector<8x64xbf16>, vector<64x64xbf16>, vector<8x64xf32> -> vector<8x64xf32>
    %c2_133 = arith.constant 2 : index
    %c0_134 = arith.constant 0 : index
    %c0_135 = arith.constant 0 : index
    %155 = vector.load %arg11[%c2_133, %c0_134, %c0_135] : memref<4x4x8xbf16, #tpu.memory_space<vmem>>, vector<1x4x8xbf16>
    %156 = vector.shape_cast %155 : vector<1x4x8xbf16> to vector<4x8xbf16>
    %157 = arith.truncf %154 : vector<8x64xf32> to vector<8x64xbf16>
    %cst_136 = arith.constant dense<0.000000e+00> : vector<4x64xf32>
    %158 = tpu.matmul %156, %157, %cst_136 {dimension_numbers = #tpu.dot_dimension_numbers<[1], [0], [0], [1], [0, 0, 1, 1], [], []>} : vector<4x8xbf16>, vector<8x64xbf16>, vector<4x64xf32> -> vector<4x64xf32>
    %159 = arith.addf %151, %158 : vector<4x64xf32>
    %c3_137 = arith.constant 3 : index
    %c0_138 = arith.constant 0 : index
    %c0_139 = arith.constant 0 : index
    %160 = vector.load %arg12[%c3_137, %c0_138, %c0_139] : memref<4x64x64xbf16, #tpu.memory_space<vmem>>, vector<1x64x64xbf16>
    %161 = vector.shape_cast %160 : vector<1x64x64xbf16> to vector<64x64xbf16>
    %cst_140 = arith.constant dense<0.000000e+00> : vector<8x64xf32>
    %162 = tpu.matmul %136, %161, %cst_140 {dimension_numbers = #tpu.dot_dimension_numbers<[1], [0], [0], [1], [0, 0, 1, 1], [], []>} : vector<8x64xbf16>, vector<64x64xbf16>, vector<8x64xf32> -> vector<8x64xf32>
    %c3_141 = arith.constant 3 : index
    %c0_142 = arith.constant 0 : index
    %c0_143 = arith.constant 0 : index
    %163 = vector.load %arg11[%c3_141, %c0_142, %c0_143] : memref<4x4x8xbf16, #tpu.memory_space<vmem>>, vector<1x4x8xbf16>
    %164 = vector.shape_cast %163 : vector<1x4x8xbf16> to vector<4x8xbf16>
    %165 = arith.truncf %162 : vector<8x64xf32> to vector<8x64xbf16>
    %cst_144 = arith.constant dense<0.000000e+00> : vector<4x64xf32>
    %166 = tpu.matmul %164, %165, %cst_144 {dimension_numbers = #tpu.dot_dimension_numbers<[1], [0], [0], [1], [0, 0, 1, 1], [], []>} : vector<4x8xbf16>, vector<8x64xbf16>, vector<4x64xf32> -> vector<4x64xf32>
    %167 = arith.addf %159, %166 : vector<4x64xf32>
    %c0_145 = arith.constant 0 : index
    %c0_146 = arith.constant 0 : index
    %168 = vector.load %arg13[%c0_145, %c0_146] : memref<4x64xf32, #tpu.memory_space<vmem>>, vector<4x64xf32>
    tpu.vector_store %arg13[%c0_145, %c0_146], %167 {strides = array<i32>} : memref<4x64xf32, #tpu.memory_space<vmem>>, vector<4x64xf32>,
    return
  }
}

</mosaic_0001>

<llo_original>
// kernel: enc_forward.1
$region0: #{enc_forward.1}
  #allocation0 [shape = 'u32[]', space=smem, size = 0x4, offset = 0x4, fixed_abs, tag = 'smem constant byte address 0x4 - core index']
  #allocation1 [shape = 'u32[144,128]{1,0:T(1,128)}', space=vmem, size = 0x12000, scoped, tag = 'internal scratch']
  %s0 = inlined_call_operand.vmem [shape: bf16[32,48], index: 0, kind: input, shape index: {}]
  %s1 = inlined_call_operand.vmem [shape: bf16[4,16,32], index: 1, kind: input, shape index: {}]
  %s2 = inlined_call_operand.vmem [shape: bf16[4,48,64], index: 2, kind: input, shape index: {}]
  %s3 = inlined_call_operand.vmem [shape: f32[2,8], index: 3, kind: input, shape index: {}]
  %s4 = inlined_call_operand.vmem [shape: f32[64,8], index: 4, kind: input, shape index: {}]
  %s5 = inlined_call_operand.vmem [shape: f32[8,64], index: 5, kind: input, shape index: {}]
  %s6 = inlined_call_operand.vmem [shape: bf16[4,8,16], index: 6, kind: input, shape index: {}]
  %s7 = inlined_call_operand.vmem [shape: bf16[4,64,64], index: 7, kind: input, shape index: {}]
  %s8 = inlined_call_operand.vmem [shape: f32[2,16], index: 8, kind: input, shape index: {}]
  %s9 = inlined_call_operand.vmem [shape: f32[64,16], index: 9, kind: input, shape index: {}]
  %s10 = inlined_call_operand.vmem [shape: f32[16,64], index: 10, kind: input, shape index: {}]
  %s11 = inlined_call_operand.vmem [shape: bf16[4,4,8], index: 11, kind: input, shape index: {}]
  %s12 = inlined_call_operand.vmem [shape: bf16[4,64,64], index: 12, kind: input, shape index: {}]
  %s13 = inlined_call_operand.vmem [shape: f32[4,64], index: 13, kind: output, shape index: {}]
  %s14 = sld [smem:[#allocation0]]
  $region62: #{enc_forward.1} parent=0
    _
  %s16 = ssub.s32 1, %s14
  %s17 = scalar_select 0, %s16, %s14
  // Predicated region
  $region2: #{enc_forward.1} parent=0 // pred_check
    _
  $region3: #{enc_forward.1} parent=0 // pred_check_branch
    %19 = sbr.rel (0) target = $region5
  $region4: #{enc_forward.1} parent=0 // pred_region
    _
  $region5: #{enc_forward.1} parent=0 // pred_fallthru
    _
  // Predicated region
  $region6: #{enc_forward.1} parent=0 // pred_check
    _
  $region7: #{enc_forward.1} parent=0 // pred_check_branch
    %21 = sbr.rel (0) target = $region9
  $region8: #{enc_forward.1} parent=0 // pred_region
    _
  $region9: #{enc_forward.1} parent=0 // pred_fallthru
    _
  // Predicated region
  $region10: #{enc_forward.1} parent=0 // pred_check
    _
  $region11: #{enc_forward.1} parent=0 // pred_check_branch
    %23 = sbr.rel (0) target = $region13
  $region12: #{enc_forward.1} parent=0 // pred_region
    _
  $region13: #{enc_forward.1} parent=0 // pred_fallthru
    _
  // Predicated region
  $region14: #{enc_forward.1} parent=0 // pred_check
    _
  $region15: #{enc_forward.1} parent=0 // pred_check_branch
    %25 = sbr.rel (0) target = $region17
  $region16: #{enc_forward.1} parent=0 // pred_region
    _
  $region17: #{enc_forward.1} parent=0 // pred_fallthru
    _
  // Predicated region
  $region18: #{enc_forward.1} parent=0 // pred_check
    _
  $region19: #{enc_forward.1} parent=0 // pred_check_branch
    %27 = sbr.rel (0) target = $region21
  $region20: #{enc_forward.1} parent=0 // pred_region
    _
  $region21: #{enc_forward.1} parent=0 // pred_fallthru
    _
  // Predicated region
  $region22: #{enc_forward.1} parent=0 // pred_check
    _
  $region23: #{enc_forward.1} parent=0 // pred_check_branch
    %29 = sbr.rel (0) target = $region25
  $region24: #{enc_forward.1} parent=0 // pred_region
    _
  $region25: #{enc_forward.1} parent=0 // pred_fallthru
    _
  // Predicated region
  $region26: #{enc_forward.1} parent=0 // pred_check
    _
  $region27: #{enc_forward.1} parent=0 // pred_check_branch
    %31 = sbr.rel (0) target = $region29
  $region28: #{enc_forward.1} parent=0 // pred_region
    _
  $region29: #{enc_forward.1} parent=0 // pred_fallthru
    _
  // Predicated region
  $region30: #{enc_forward.1} parent=0 // pred_check
    _
  $region31: #{enc_forward.1} parent=0 // pred_check_branch
    %33 = sbr.rel (0) target = $region33
  $region32: #{enc_forward.1} parent=0 // pred_region
    _
  $region33: #{enc_forward.1} parent=0 // pred_fallthru
    _
  // Predicated region
  $region34: #{enc_forward.1} parent=0 // pred_check
    _
  $region35: #{enc_forward.1} parent=0 // pred_check_branch
    %35 = sbr.rel (0) target = $region37
  $region36: #{enc_forward.1} parent=0 // pred_region
    _
  $region37: #{enc_forward.1} parent=0 // pred_fallthru
    _
  // Predicated region
  $region38: #{enc_forward.1} parent=0 // pred_check
    _
  $region39: #{enc_forward.1} parent=0 // pred_check_branch
    %37 = sbr.rel (0) target = $region41
  $region40: #{enc_forward.1} parent=0 // pred_region
    _
  $region41: #{enc_forward.1} parent=0 // pred_fallthru
    _
  // Predicated region
  $region42: #{enc_forward.1} parent=0 // pred_check
    _
  $region43: #{enc_forward.1} parent=0 // pred_check_branch
    %39 = sbr.rel (0) target = $region45
  $region44: #{enc_forward.1} parent=0 // pred_region
    _
  $region45: #{enc_forward.1} parent=0 // pred_fallthru
    _
  // Predicated region
  $region46: #{enc_forward.1} parent=0 // pred_check
    _
  $region47: #{enc_forward.1} parent=0 // pred_check_branch
    %41 = sbr.rel (0) target = $region49
  $region48: #{enc_forward.1} parent=0 // pred_region
    _
  $region49: #{enc_forward.1} parent=0 // pred_fallthru
    _
  // Predicated region
  $region50: #{enc_forward.1} parent=0 // pred_check
    _
  $region51: #{enc_forward.1} parent=0 // pred_check_branch
    %43 = sbr.rel (0) target = $region53
  $region52: #{enc_forward.1} parent=0 // pred_region
    _
  $region53: #{enc_forward.1} parent=0 // pred_fallthru
    _
  %v45 = vld [vmem:[%s0] sm:$0xf]
  %v46 = vld [vmem:[%s0 + $0x4] sm:$0xf]
  %v47 = vld [vmem:[%s0 + $0x8] sm:$0xf]
  %v48 = vld [vmem:[%s0 + $0xc] sm:$0xf]
  %v49 = vld [vmem:[%s2] sm:$0xf]
  %v50 = vld [vmem:[%s2 + $0x4] sm:$0xf]
  %v51 = vld [vmem:[%s2 + $0x8] sm:$0xf]
  %v52 = vld [vmem:[%s2 + $0xc] sm:$0xf]
  %v53 = vld [vmem:[%s2 + $0x10] sm:$0xf]
  %v54 = vld [vmem:[%s2 + $0x14] sm:$0xf]
  %v59 = vunpack.c.l.b16 %v45
  %v60 = vunpack.c.l.b16 %v46
  %v61 = vunpack.c.l.b16 %v47
  %v62 = vunpack.c.l.b16 %v48
  %v63 = vpack.c.b16 %v60, %v59
  %v64 = vpack.c.b16 %v62, %v61
  %v71 = vunpack.c.l.b16 %v49
  %v72 = vunpack.c.l.b16 %v50
  %v73 = vunpack.c.l.b16 %v51
  %v74 = vunpack.c.l.b16 %v52
  %v75 = vunpack.c.l.b16 %v53
  %v76 = vunpack.c.l.b16 %v54
  %v77 = vpack.c.b16 %v72, %v71
  %v78 = vpack.c.b16 %v74, %v73
  %v79 = vpack.c.b16 %v76, %v75
  %vm83 = vcmask 392192
  %v85 = vsel %vm83, %v63, 0
  %v88 = vsel %vm83, %v64, 0
  %90 = vmatprep.subr.bf16.mxu0 0
  %91 = vmatpush1.bf16.msra.mxu0 0
  %92 = vmatprep.subr.bf16.mxu0 0
  %93 = vmatpush1.bf16.msra.mxu0 0
  %94 = vmatprep.subr.bf16.mxu0 0
  %95 = vmatpush1.bf16.msra.mxu0 0
  %96 = vmatprep.subr.bf16.mxu0 0
  %97 = vmatpush1.bf16.msra.mxu0 0
  %98 = vmatprep.subr.bf16.mxu0 0
  %99 = vmatpush1.bf16.msra.mxu0 0
  %100 = vmatprep.subr.bf16.mxu0 0
  %101 = vmatpush1.bf16.msra.mxu0 %v79
  %102 = vmatprep.subr.bf16.mxu0 0
  %103 = vmatpush1.bf16.msra.mxu0 %v78
  %104 = vmatprep.subr.bf16.mxu0 0
  %105 = vmatpush1.bf16.msra.mxu0 %v77
  %106 = vmatprep.subr.bf16.mxu0 0
  %107 = vmatpush2.bf16.msra.mxu0 0
  %108 = vmatprep.subr.bf16.mxu0 0
  %109 = vmatpush2.bf16.msra.mxu0 0
  %110 = vmatprep.subr.bf16.mxu0 0
  %111 = vmatpush2.bf16.msra.mxu0 0
  %112 = vmatprep.subr.bf16.mxu0 0
  %113 = vmatpush2.bf16.msra.mxu0 0
  %114 = vmatprep.subr.bf16.mxu0 0
  %115 = vmatpush2.bf16.msra.mxu0 0
  %116 = vmatprep.subr.bf16.mxu0 0
  %117 = vmatpush2.bf16.msra.mxu0 0
  %118 = vmatprep.subr.bf16.mxu0 0
  %119 = vmatpush2.bf16.msra.mxu0 0
  %120 = vmatprep.subr.bf16.mxu0 0
  %121 = vmatpush2.bf16.msra.mxu0 0
  %122 = vmatprep.mubr.bf16.mxu0 0
  %123 = vmatmul.mubr.bf16.gmra.mxu0 %v85
  %v124 = vpop.f32.mrf.mxu0
  %v125 = vadd.f32 0.0, %v124
  %v126 = vpop.f32.mrf.mxu0
  %v127 = vpop.f32.mrf.mxu0
  %v128 = vadd.f32 0.0, %v127
  %v129 = vpop.f32.mrf.mxu0
  %130 = vmatprep.mubr.bf16.mxu0 0
  %131 = vmatmul.mubr.bf16.gmra.mxu0 %v88
  %v132 = vpop.f32.mrf.mxu0
  %v133 = vadd.f32 0.0, %v132
  %v134 = vpop.f32.mrf.mxu0
  %v135 = vpop.f32.mrf.mxu0
  %v136 = vadd.f32 0.0, %v135
  %v137 = vpop.f32.mrf.mxu0
  %138 = vdwg.mxu0
  %v139 = vld [vmem:[%s1] sm:$0xf]
  %v140 = vld [vmem:[%s1 + $0x4] sm:$0xf]
  %v141 = vpack.c.bf16 %v128, %v125
  %v142 = vpack.c.bf16 %v136, %v133
  %s143 = scalar_lea.vmem %s2, 24
  %v144 = vld [vmem:[%s143] sm:$0xf]
  %v145 = vld [vmem:[%s143 + $0x4] sm:$0xf]
  %v146 = vld [vmem:[%s143 + $0x8] sm:$0xf]
  %v147 = vld [vmem:[%s143 + $0xc] sm:$0xf]
  %v148 = vld [vmem:[%s143 + $0x10] sm:$0xf]
  %v149 = vld [vmem:[%s143 + $0x14] sm:$0xf]
  %v156 = vunpack.c.l.b16 %v144
  %v157 = vunpack.c.l.b16 %v145
  %v158 = vunpack.c.l.b16 %v146
  %v159 = vunpack.c.l.b16 %v147
  %v160 = vunpack.c.l.b16 %v148
  %v161 = vunpack.c.l.b16 %v149
  %v162 = vpack.c.b16 %v157, %v156
  %v163 = vpack.c.b16 %v159, %v158
  %v164 = vpack.c.b16 %v161, %v160
  %168 = vmatprep.subr.bf16.mxu0 0
  %169 = vmatpush1.bf16.msra.mxu0 0
  %170 = vmatprep.subr.bf16.mxu0 0
  %171 = vmatpush1.bf16.msra.mxu0 0
  %172 = vmatprep.subr.bf16.mxu0 0
  %173 = vmatpush1.bf16.msra.mxu0 0
  %174 = vmatprep.subr.bf16.mxu0 0
  %175 = vmatpush1.bf16.msra.mxu0 0
  %176 = vmatprep.subr.bf16.mxu0 0
  %177 = vmatpush1.bf16.msra.mxu0 0
  %178 = vmatprep.subr.bf16.mxu0 0
  %179 = vmatpush1.bf16.msra.mxu0 %v164
  %180 = vmatprep.subr.bf16.mxu0 0
  %181 = vmatpush1.bf16.msra.mxu0 %v163
  %182 = vmatprep.subr.bf16.mxu0 0
  %183 = vmatpush1.bf16.msra.mxu0 %v162
  %184 = vmatprep.subr.bf16.mxu0 0
  %185 = vmatpush2.bf16.msra.mxu0 0
  %186 = vmatprep.subr.bf16.mxu0 0
  %187 = vmatpush2.bf16.msra.mxu0 0
  %188 = vmatprep.subr.bf16.mxu0 0
  %189 = vmatpush2.bf16.msra.mxu0 0
  %190 = vmatprep.subr.bf16.mxu0 0
  %191 = vmatpush2.bf16.msra.mxu0 0
  %192 = vmatprep.subr.bf16.mxu0 0
  %193 = vmatpush2.bf16.msra.mxu0 0
  %194 = vmatprep.subr.bf16.mxu0 0
  %195 = vmatpush2.bf16.msra.mxu0 0
  %196 = vmatprep.subr.bf16.mxu0 0
  %197 = vmatpush2.bf16.msra.mxu0 0
  %198 = vmatprep.subr.bf16.mxu0 0
  %199 = vmatpush2.bf16.msra.mxu0 0
  %200 = vmatprep.mubr.bf16.mxu0 0
  %201 = vmatmul.mubr.bf16.gmra.mxu0 %v85
  %v202 = vpop.f32.mrf.mxu0
  %v203 = vadd.f32 0.0, %v202
  %v204 = vpop.f32.mrf.mxu0
  %v205 = vpop.f32.mrf.mxu0
  %v206 = vadd.f32 0.0, %v205
  %v207 = vpop.f32.mrf.mxu0
  %208 = vmatprep.mubr.bf16.mxu0 0
  %209 = vmatmul.mubr.bf16.gmra.mxu0 %v88
  %v210 = vpop.f32.mrf.mxu0
  %v211 = vadd.f32 0.0, %v210
  %v212 = vpop.f32.mrf.mxu0
  %v213 = vpop.f32.mrf.mxu0
  %v214 = vadd.f32 0.0, %v213
  %v215 = vpop.f32.mrf.mxu0
  %216 = vdwg.mxu0
  %s217 = scalar_lea.vmem %s1, 8
  %v218 = vld [vmem:[%s217] sm:$0xf]
  %v219 = vld [vmem:[%s217 + $0x4] sm:$0xf]
  %v220 = vpack.c.bf16 %v206, %v203
  %v221 = vpack.c.bf16 %v214, %v211
  %v224 = vunpack.c.l.b16 %v218
  %v225 = vunpack.c.l.b16 %v219
  %v226 = vpack.c.b16 %v225, %v224
  %vm227 = vcmask 261120
  %v229 = vsel %vm227, %v226, 0
  %231 = vmatprep.subr.bf16.mxu0 0
  %232 = vmatpush1.bf16.msra.mxu0 0
  %233 = vmatprep.subr.bf16.mxu0 0
  %234 = vmatpush1.bf16.msra.mxu0 0
  %235 = vmatprep.subr.bf16.mxu0 0
  %236 = vmatpush1.bf16.msra.mxu0 0
  %237 = vmatprep.subr.bf16.mxu0 0
  %238 = vmatpush1.bf16.msra.mxu0 0
  %239 = vmatprep.subr.bf16.mxu0 0
  %240 = vmatpush1.bf16.msra.mxu0 0
  %241 = vmatprep.subr.bf16.mxu0 0
  %242 = vmatpush1.bf16.msra.mxu0 0
  %243 = vmatprep.subr.bf16.mxu0 0
  %244 = vmatpush1.bf16.msra.mxu0 %v221
  %245 = vmatprep.subr.bf16.mxu0 0
  %246 = vmatpush1.bf16.msra.mxu0 %v220
  %247 = vmatprep.subr.bf16.mxu0 0
  %248 = vmatpush2.bf16.msra.mxu0 0
  %249 = vmatprep.subr.bf16.mxu0 0
  %250 = vmatpush2.bf16.msra.mxu0 0
  %251 = vmatprep.subr.bf16.mxu0 0
  %252 = vmatpush2.bf16.msra.mxu0 0
  %253 = vmatprep.subr.bf16.mxu0 0
  %254 = vmatpush2.bf16.msra.mxu0 0
  %255 = vmatprep.subr.bf16.mxu0 0
  %256 = vmatpush2.bf16.msra.mxu0 0
  %257 = vmatprep.subr.bf16.mxu0 0
  %258 = vmatpush2.bf16.msra.mxu0 0
  %259 = vmatprep.subr.bf16.mxu0 0
  %260 = vmatpush2.bf16.msra.mxu0 0
  %261 = vmatprep.subr.bf16.mxu0 0
  %262 = vmatpush2.bf16.msra.mxu0 0
  %263 = vmatprep.mubr.bf16.mxu0 0
  %264 = vmatmul.mubr.bf16.gmra.mxu0 %v229
  %v265 = vpop.f32.mrf.mxu0
  %v266 = vadd.f32 0.0, %v265
  %v267 = vpop.f32.mrf.mxu0
  %v268 = vpop.f32.mrf.mxu0
  %v269 = vadd.f32 0.0, %v268
  %v270 = vpop.f32.mrf.mxu0
  %271 = vdwg.mxu0
  %v274 = vunpack.c.l.b16 %v139
  %v275 = vunpack.c.l.b16 %v140
  %v276 = vpack.c.b16 %v275, %v274
  %v278 = vsel %vm227, %v276, 0
  %280 = vmatprep.subr.bf16.mxu0 0
  %281 = vmatpush1.bf16.msra.mxu0 0
  %282 = vmatprep.subr.bf16.mxu0 0
  %283 = vmatpush1.bf16.msra.mxu0 0
  %284 = vmatprep.subr.bf16.mxu0 0
  %285 = vmatpush1.bf16.msra.mxu0 0
  %286 = vmatprep.subr.bf16.mxu0 0
  %287 = vmatpush1.bf16.msra.mxu0 0
  %288 = vmatprep.subr.bf16.mxu0 0
  %289 = vmatpush1.bf16.msra.mxu0 0
  %290 = vmatprep.subr.bf16.mxu0 0
  %291 = vmatpush1.bf16.msra.mxu0 0
  %292 = vmatprep.subr.bf16.mxu0 0
  %293 = vmatpush1.bf16.msra.mxu0 %v142
  %294 = vmatprep.subr.bf16.mxu0 0
  %295 = vmatpush1.bf16.msra.mxu0 %v141
  %296 = vmatprep.subr.bf16.mxu0 0
  %297 = vmatpush2.bf16.msra.mxu0 0
  %298 = vmatprep.subr.bf16.mxu0 0
  %299 = vmatpush2.bf16.msra.mxu0 0
  %300 = vmatprep.subr.bf16.mxu0 0
  %301 = vmatpush2.bf16.msra.mxu0 0
  %302 = vmatprep.subr.bf16.mxu0 0
  %303 = vmatpush2.bf16.msra.mxu0 0
  %304 = vmatprep.subr.bf16.mxu0 0
  %305 = vmatpush2.bf16.msra.mxu0 0
  %306 = vmatprep.subr.bf16.mxu0 0
  %307 = vmatpush2.bf16.msra.mxu0 0
  %308 = vmatprep.subr.bf16.mxu0 0
  %309 = vmatpush2.bf16.msra.mxu0 0
  %310 = vmatprep.subr.bf16.mxu0 0
  %311 = vmatpush2.bf16.msra.mxu0 0
  %312 = vmatprep.mubr.bf16.mxu0 0
  %313 = vmatmul.mubr.bf16.gmra.mxu0 %v278
  %v314 = vpop.f32.mrf.mxu0
  %v315 = vadd.f32 %v266, %v314
  %v316 = vpop.f32.mrf.mxu0
  %v317 = vpop.f32.mrf.mxu0
  %v318 = vadd.f32 %v269, %v317
  %v319 = vpop.f32.mrf.mxu0
  %320 = vdwg.mxu0
  %s321 = scalar_lea.vmem %s2, 48
  %v322 = vld [vmem:[%s321] sm:$0xf]
  %v323 = vld [vmem:[%s321 + $0x4] sm:$0xf]
  %v324 = vld [vmem:[%s321 + $0x8] sm:$0xf]
  %v325 = vld [vmem:[%s321 + $0xc] sm:$0xf]
  %v326 = vld [vmem:[%s321 + $0x10] sm:$0xf]
  %v327 = vld [vmem:[%s321 + $0x14] sm:$0xf]
  %v334 = vunpack.c.l.b16 %v322
  %v335 = vunpack.c.l.b16 %v323
  %v336 = vunpack.c.l.b16 %v324
  %v337 = vunpack.c.l.b16 %v325
  %v338 = vunpack.c.l.b16 %v326
  %v339 = vunpack.c.l.b16 %v327
  %v340 = vpack.c.b16 %v335, %v334
  %v341 = vpack.c.b16 %v337, %v336
  %v342 = vpack.c.b16 %v339, %v338
  %346 = vmatprep.subr.bf16.mxu0 0
  %347 = vmatpush1.bf16.msra.mxu0 0
  %348 = vmatprep.subr.bf16.mxu0 0
  %349 = vmatpush1.bf16.msra.mxu0 0
  %350 = vmatprep.subr.bf16.mxu0 0
  %351 = vmatpush1.bf16.msra.mxu0 0
  %352 = vmatprep.subr.bf16.mxu0 0
  %353 = vmatpush1.bf16.msra.mxu0 0
  %354 = vmatprep.subr.bf16.mxu0 0
  %355 = vmatpush1.bf16.msra.mxu0 0
  %356 = vmatprep.subr.bf16.mxu0 0
  %357 = vmatpush1.bf16.msra.mxu0 %v342
  %358 = vmatprep.subr.bf16.mxu0 0
  %359 = vmatpush1.bf16.msra.mxu0 %v341
  %360 = vmatprep.subr.bf16.mxu0 0
  %361 = vmatpush1.bf16.msra.mxu0 %v340
  %362 = vmatprep.subr.bf16.mxu0 0
  %363 = vmatpush2.bf16.msra.mxu0 0
  %364 = vmatprep.subr.bf16.mxu0 0
  %365 = vmatpush2.bf16.msra.mxu0 0
  %366 = vmatprep.subr.bf16.mxu0 0
  %367 = vmatpush2.bf16.msra.mxu0 0
  %368 = vmatprep.subr.bf16.mxu0 0
  %369 = vmatpush2.bf16.msra.mxu0 0
  %370 = vmatprep.subr.bf16.mxu0 0
  %371 = vmatpush2.bf16.msra.mxu0 0
  %372 = vmatprep.subr.bf16.mxu0 0
  %373 = vmatpush2.bf16.msra.mxu0 0
  %374 = vmatprep.subr.bf16.mxu0 0
  %375 = vmatpush2.bf16.msra.mxu0 0
  %376 = vmatprep.subr.bf16.mxu0 0
  %377 = vmatpush2.bf16.msra.mxu0 0
  %378 = vmatprep.mubr.bf16.mxu0 0
  %379 = vmatmul.mubr.bf16.gmra.mxu0 %v85
  %v380 = vpop.f32.mrf.mxu0
  %v381 = vadd.f32 0.0, %v380
  %v382 = vpop.f32.mrf.mxu0
  %v383 = vpop.f32.mrf.mxu0
  %v384 = vadd.f32 0.0, %v383
  %v385 = vpop.f32.mrf.mxu0
  %386 = vmatprep.mubr.bf16.mxu0 0
  %387 = vmatmul.mubr.bf16.gmra.mxu0 %v88
  %v388 = vpop.f32.mrf.mxu0
  %v389 = vadd.f32 0.0, %v388
  %v390 = vpop.f32.mrf.mxu0
  %v391 = vpop.f32.mrf.mxu0
  %v392 = vadd.f32 0.0, %v391
  %v393 = vpop.f32.mrf.mxu0
  %394 = vdwg.mxu0
  %s395 = scalar_lea.vmem %s1, 16
  %v396 = vld [vmem:[%s395] sm:$0xf]
  %v397 = vld [vmem:[%s395 + $0x4] sm:$0xf]
  %v398 = vpack.c.bf16 %v384, %v381
  %v399 = vpack.c.bf16 %v392, %v389
  %v402 = vunpack.c.l.b16 %v396
  %v403 = vunpack.c.l.b16 %v397
  %v404 = vpack.c.b16 %v403, %v402
  %v406 = vsel %vm227, %v404, 0
  %408 = vmatprep.subr.bf16.mxu0 0
  %409 = vmatpush1.bf16.msra.mxu0 0
  %410 = vmatprep.subr.bf16.mxu0 0
  %411 = vmatpush1.bf16.msra.mxu0 0
  %412 = vmatprep.subr.bf16.mxu0 0
  %413 = vmatpush1.bf16.msra.mxu0 0
  %414 = vmatprep.subr.bf16.mxu0 0
  %415 = vmatpush1.bf16.msra.mxu0 0
  %416 = vmatprep.subr.bf16.mxu0 0
  %417 = vmatpush1.bf16.msra.mxu0 0
  %418 = vmatprep.subr.bf16.mxu0 0
  %419 = vmatpush1.bf16.msra.mxu0 0
  %420 = vmatprep.subr.bf16.mxu0 0
  %421 = vmatpush1.bf16.msra.mxu0 %v399
  %422 = vmatprep.subr.bf16.mxu0 0
  %423 = vmatpush1.bf16.msra.mxu0 %v398
  %424 = vmatprep.subr.bf16.mxu0 0
  %425 = vmatpush2.bf16.msra.mxu0 0
  %426 = vmatprep.subr.bf16.mxu0 0
  %427 = vmatpush2.bf16.msra.mxu0 0
  %428 = vmatprep.subr.bf16.mxu0 0
  %429 = vmatpush2.bf16.msra.mxu0 0
  %430 = vmatprep.subr.bf16.mxu0 0
  %431 = vmatpush2.bf16.msra.mxu0 0
  %432 = vmatprep.subr.bf16.mxu0 0
  %433 = vmatpush2.bf16.msra.mxu0 0
  %434 = vmatprep.subr.bf16.mxu0 0
  %435 = vmatpush2.bf16.msra.mxu0 0
  %436 = vmatprep.subr.bf16.mxu0 0
  %437 = vmatpush2.bf16.msra.mxu0 0
  %438 = vmatprep.subr.bf16.mxu0 0
  %439 = vmatpush2.bf16.msra.mxu0 0
  %440 = vmatprep.mubr.bf16.mxu0 0
  %441 = vmatmul.mubr.bf16.gmra.mxu0 %v406
  %v442 = vpop.f32.mrf.mxu0
  %v443 = vadd.f32 0.0, %v442
  %v444 = vpop.f32.mrf.mxu0
  %v445 = vpop.f32.mrf.mxu0
  %v446 = vadd.f32 0.0, %v445
  %v447 = vpop.f32.mrf.mxu0
  %448 = vdwg.mxu0
  %v449 = vadd.f32 %v315, %v443
  %v450 = vadd.f32 %v318, %v446
  %s451 = scalar_lea.vmem %s2, 72
  %v452 = vld [vmem:[%s451] sm:$0xf]
  %v453 = vld [vmem:[%s451 + $0x4] sm:$0xf]
  %v454 = vld [vmem:[%s451 + $0x8] sm:$0xf]
  %v455 = vld [vmem:[%s451 + $0xc] sm:$0xf]
  %v456 = vld [vmem:[%s451 + $0x10] sm:$0xf]
  %v457 = vld [vmem:[%s451 + $0x14] sm:$0xf]
  %v464 = vunpack.c.l.b16 %v452
  %v465 = vunpack.c.l.b16 %v453
  %v466 = vunpack.c.l.b16 %v454
  %v467 = vunpack.c.l.b16 %v455
  %v468 = vunpack.c.l.b16 %v456
  %v469 = vunpack.c.l.b16 %v457
  %v470 = vpack.c.b16 %v465, %v464
  %v471 = vpack.c.b16 %v467, %v466
  %v472 = vpack.c.b16 %v469, %v468
  %476 = vmatprep.subr.bf16.mxu0 0
  %477 = vmatpush1.bf16.msra.mxu0 0
  %478 = vmatprep.subr.bf16.mxu0 0
  %479 = vmatpush1.bf16.msra.mxu0 0
  %480 = vmatprep.subr.bf16.mxu0 0
  %481 = vmatpush1.bf16.msra.mxu0 0
  %482 = vmatprep.subr.bf16.mxu0 0
  %483 = vmatpush1.bf16.msra.mxu0 0
  %484 = vmatprep.subr.bf16.mxu0 0
  %485 = vmatpush1.bf16.msra.mxu0 0
  %486 = vmatprep.subr.bf16.mxu0 0
  %487 = vmatpush1.bf16.msra.mxu0 %v472
  %488 = vmatprep.subr.bf16.mxu0 0
  %489 = vmatpush1.bf16.msra.mxu0 %v471
  %490 = vmatprep.subr.bf16.mxu0 0
  %491 = vmatpush1.bf16.msra.mxu0 %v470
  %492 = vmatprep.subr.bf16.mxu0 0
  %493 = vmatpush2.bf16.msra.mxu0 0
  %494 = vmatprep.subr.bf16.mxu0 0
  %495 = vmatpush2.bf16.msra.mxu0 0
  %496 = vmatprep.subr.bf16.mxu0 0
  %497 = vmatpush2.bf16.msra.mxu0 0
  %498 = vmatprep.subr.bf16.mxu0 0
  %499 = vmatpush2.bf16.msra.mxu0 0
  %500 = vmatprep.subr.bf16.mxu0 0
  %501 = vmatpush2.bf16.msra.mxu0 0
  %502 = vmatprep.subr.bf16.mxu0 0
  %503 = vmatpush2.bf16.msra.mxu0 0
  %504 = vmatprep.subr.bf16.mxu0 0
  %505 = vmatpush2.bf16.msra.mxu0 0
  %506 = vmatprep.subr.bf16.mxu0 0
  %507 = vmatpush2.bf16.msra.mxu0 0
  %508 = vmatprep.mubr.bf16.mxu0 0
  %509 = vmatmul.mubr.bf16.gmra.mxu0 %v85
  %v510 = vpop.f32.mrf.mxu0
  %v511 = vadd.f32 0.0, %v510
  %v512 = vpop.f32.mrf.mxu0
  %v513 = vpop.f32.mrf.mxu0
  %v514 = vadd.f32 0.0, %v513
  %v515 = vpop.f32.mrf.mxu0
  %516 = vmatprep.mubr.bf16.mxu0 0
  %517 = vmatmul.mubr.bf16.gmra.mxu0 %v88
  %v518 = vpop.f32.mrf.mxu0
  %v519 = vadd.f32 0.0, %v518
  %v520 = vpop.f32.mrf.mxu0
  %v521 = vpop.f32.mrf.mxu0
  %v522 = vadd.f32 0.0, %v521
  %v523 = vpop.f32.mrf.mxu0
  %524 = vdwg.mxu0
  %s525 = scalar_lea.vmem %s1, 24
  %v526 = vld [vmem:[%s525] sm:$0xf]
  %v527 = vld [vmem:[%s525 + $0x4] sm:$0xf]
  %v528 = vpack.c.bf16 %v514, %v511
  %v529 = vpack.c.bf16 %v522, %v519
  %v532 = vunpack.c.l.b16 %v526
  %v533 = vunpack.c.l.b16 %v527
  %v534 = vpack.c.b16 %v533, %v532
  %v536 = vsel %vm227, %v534, 0
  %538 = vmatprep.subr.bf16.mxu0 0
  %539 = vmatpush1.bf16.msra.mxu0 0
  %540 = vmatprep.subr.bf16.mxu0 0
  %541 = vmatpush1.bf16.msra.mxu0 0
  %542 = vmatprep.subr.bf16.mxu0 0
  %543 = vmatpush1.bf16.msra.mxu0 0
  %544 = vmatprep.subr.bf16.mxu0 0
  %545 = vmatpush1.bf16.msra.mxu0 0
  %546 = vmatprep.subr.bf16.mxu0 0
  %547 = vmatpush1.bf16.msra.mxu0 0
  %548 = vmatprep.subr.bf16.mxu0 0
  %549 = vmatpush1.bf16.msra.mxu0 0
  %550 = vmatprep.subr.bf16.mxu0 0
  %551 = vmatpush1.bf16.msra.mxu0 %v529
  %552 = vmatprep.subr.bf16.mxu0 0
  %553 = vmatpush1.bf16.msra.mxu0 %v528
  %554 = vmatprep.subr.bf16.mxu0 0
  %555 = vmatpush2.bf16.msra.mxu0 0
  %556 = vmatprep.subr.bf16.mxu0 0
  %557 = vmatpush2.bf16.msra.mxu0 0
  %558 = vmatprep.subr.bf16.mxu0 0
  %559 = vmatpush2.bf16.msra.mxu0 0
  %560 = vmatprep.subr.bf16.mxu0 0
  %561 = vmatpush2.bf16.msra.mxu0 0
  %562 = vmatprep.subr.bf16.mxu0 0
  %563 = vmatpush2.bf16.msra.mxu0 0
  %564 = vmatprep.subr.bf16.mxu0 0
  %565 = vmatpush2.bf16.msra.mxu0 0
  %566 = vmatprep.subr.bf16.mxu0 0
  %567 = vmatpush2.bf16.msra.mxu0 0
  %568 = vmatprep.subr.bf16.mxu0 0
  %569 = vmatpush2.bf16.msra.mxu0 0
  %570 = vmatprep.mubr.bf16.mxu0 0
  %571 = vmatmul.mubr.bf16.gmra.mxu0 %v536
  %v572 = vpop.f32.mrf.mxu0
  %v573 = vadd.f32 0.0, %v572
  %v574 = vpop.f32.mrf.mxu0
  %v575 = vpop.f32.mrf.mxu0
  %v576 = vadd.f32 0.0, %v575
  %v577 = vpop.f32.mrf.mxu0
  %578 = vdwg.mxu0
  %v579 = vadd.f32 %v449, %v573
  %v580 = vadd.f32 %v450, %v576
  %vm581 = vcmask 523264
  %v582 = vsel %vm581, %v579, 0.0
  %v583 = vsel %vm581, %v580, 0.0
  %v584 = vadd.f32 %v582, %v583
  %v585 = vrot.slane %v584, 4
  %v586 = vadd.f32 %v584, %v585
  %v587 = vrot.slane %v586, 2
  %v588 = vadd.f32 %v586, %v587
  %v589 = vrot.slane %v588, 1
  %v590 = vadd.f32 %v588, %v589
  %v591 = vld [vmem:[%s4] sm:$0xff]
  %v592 = vld [vmem:[%s4 + $0x8] sm:$0xff]
  %v593 = vld [vmem:[%s4 + $0x10] sm:$0xff]
  %v594 = vld [vmem:[%s4 + $0x18] sm:$0xff]
  %v595 = vld [vmem:[%s4 + $0x20] sm:$0xff]
  %v596 = vld [vmem:[%s4 + $0x28] sm:$0xff]
  %v597 = vld [vmem:[%s4 + $0x30] sm:$0xff]
  %v598 = vld [vmem:[%s4 + $0x38] sm:$0xff]
  %v600 = vsel %vm581, %v590, 0
  %602 = vmatprep.subr.mxu0 0.0
  %603 = vmatpush1.msra.mxu0 0.0
  %604 = vmatprep.subr.mxu0 0.0
  %605 = vmatpush1.msra.mxu0 0.0
  %606 = vmatprep.subr.mxu0 0.0
  %607 = vmatpush1.msra.mxu0 0.0
  %608 = vmatprep.subr.mxu0 0.0
  %609 = vmatpush1.msra.mxu0 0.0
  %610 = vmatprep.subr.mxu0 0.0
  %611 = vmatpush1.msra.mxu0 0.0
  %612 = vmatprep.subr.mxu0 0.0
  %613 = vmatpush1.msra.mxu0 0.0
  %614 = vmatprep.subr.mxu0 0.0
  %615 = vmatpush1.msra.mxu0 0.0
  %616 = vmatprep.subr.mxu0 0.0
  %617 = vmatpush1.msra.mxu0 0.0
  %618 = vmatprep.subr.mxu0 0.0
  %619 = vmatpush1.msra.mxu0 %v598
  %620 = vmatprep.subr.mxu0 0.0
  %621 = vmatpush1.msra.mxu0 %v597
  %622 = vmatprep.subr.mxu0 0.0
  %623 = vmatpush1.msra.mxu0 %v596
  %624 = vmatprep.subr.mxu0 0.0
  %625 = vmatpush1.msra.mxu0 %v595
  %626 = vmatprep.subr.mxu0 0.0
  %627 = vmatpush1.msra.mxu0 %v594
  %628 = vmatprep.subr.mxu0 0.0
  %629 = vmatpush1.msra.mxu0 %v593
  %630 = vmatprep.subr.mxu0 0.0
  %631 = vmatpush1.msra.mxu0 %v592
  %632 = vmatprep.subr.mxu0 0.0
  %633 = vmatpush1.msra.mxu0 %v591
  %634 = vmatprep.subr.mxu0 0.0
  %635 = vmatpush2.msra.mxu0 0.0
  %636 = vmatprep.subr.mxu0 0.0
  %637 = vmatpush2.msra.mxu0 0.0
  %638 = vmatprep.subr.mxu0 0.0
  %639 = vmatpush2.msra.mxu0 0.0
  %640 = vmatprep.subr.mxu0 0.0
  %641 = vmatpush2.msra.mxu0 0.0
  %642 = vmatprep.subr.mxu0 0.0
  %643 = vmatpush2.msra.mxu0 0.0
  %644 = vmatprep.subr.mxu0 0.0
  %645 = vmatpush2.msra.mxu0 0.0
  %646 = vmatprep.subr.mxu0 0.0
  %647 = vmatpush2.msra.mxu0 0.0
  %648 = vmatprep.subr.mxu0 0.0
  %649 = vmatpush2.msra.mxu0 0.0
  %650 = vmatprep.subr.mxu0 0.0
  %651 = vmatpush2.msra.mxu0 0.0
  %652 = vmatprep.subr.mxu0 0.0
  %653 = vmatpush2.msra.mxu0 0.0
  %654 = vmatprep.subr.mxu0 0.0
  %655 = vmatpush2.msra.mxu0 0.0
  %656 = vmatprep.subr.mxu0 0.0
  %657 = vmatpush2.msra.mxu0 0.0
  %658 = vmatprep.subr.mxu0 0.0
  %659 = vmatpush2.msra.mxu0 0.0
  %660 = vmatprep.subr.mxu0 0.0
  %661 = vmatpush2.msra.mxu0 0.0
  %662 = vmatprep.subr.mxu0 0.0
  %663 = vmatpush2.msra.mxu0 0.0
  %664 = vmatprep.subr.mxu0 0.0
  %665 = vmatpush2.msra.mxu0 0.0
  %666 = vmatprep.mubr.f32.mxu0 0.0
  %667 = vmatmul.mubr.f32.gmra.mxu0 %v600
  %v668 = vpop.f32.mrf.mxu0
  %v669 = vadd.f32 0.0, %v668
  %v670 = vpop.f32.mrf.mxu0
  %671 = vdwg.mxu0
  %v672 = vmul.f32 %v669, 0.0078125
  %v673 = vld [vmem:[%s5] sm:$0xff]
  %vm674 = vcmask 64512
  %v676 = vsel %vm674, %v672, 0
  %678 = vmatprep.subr.mxu0 0.0
  %679 = vmatpush1.msra.mxu0 0.0
  %680 = vmatprep.subr.mxu0 0.0
  %681 = vmatpush1.msra.mxu0 0.0
  %682 = vmatprep.subr.mxu0 0.0
  %683 = vmatpush1.msra.mxu0 0.0
  %684 = vmatprep.subr.mxu0 0.0
  %685 = vmatpush1.msra.mxu0 0.0
  %686 = vmatprep.subr.mxu0 0.0
  %687 = vmatpush1.msra.mxu0 0.0
  %688 = vmatprep.subr.mxu0 0.0
  %689 = vmatpush1.msra.mxu0 0.0
  %690 = vmatprep.subr.mxu0 0.0
  %691 = vmatpush1.msra.mxu0 0.0
  %692 = vmatprep.subr.mxu0 0.0
  %693 = vmatpush1.msra.mxu0 0.0
  %694 = vmatprep.subr.mxu0 0.0
  %695 = vmatpush1.msra.mxu0 0.0
  %696 = vmatprep.subr.mxu0 0.0
  %697 = vmatpush1.msra.mxu0 0.0
  %698 = vmatprep.subr.mxu0 0.0
  %699 = vmatpush1.msra.mxu0 0.0
  %700 = vmatprep.subr.mxu0 0.0
  %701 = vmatpush1.msra.mxu0 0.0
  %702 = vmatprep.subr.mxu0 0.0
  %703 = vmatpush1.msra.mxu0 0.0
  %704 = vmatprep.subr.mxu0 0.0
  %705 = vmatpush1.msra.mxu0 0.0
  %706 = vmatprep.subr.mxu0 0.0
  %707 = vmatpush1.msra.mxu0 0.0
  %708 = vmatprep.subr.mxu0 0.0
  %709 = vmatpush1.msra.mxu0 %v673
  %710 = vmatprep.subr.mxu0 0.0
  %711 = vmatpush2.msra.mxu0 0.0
  %712 = vmatprep.subr.mxu0 0.0
  %713 = vmatpush2.msra.mxu0 0.0
  %714 = vmatprep.subr.mxu0 0.0
  %715 = vmatpush2.msra.mxu0 0.0
  %716 = vmatprep.subr.mxu0 0.0
  %717 = vmatpush2.msra.mxu0 0.0
  %718 = vmatprep.subr.mxu0 0.0
  %719 = vmatpush2.msra.mxu0 0.0
  %720 = vmatprep.subr.mxu0 0.0
  %721 = vmatpush2.msra.mxu0 0.0
  %722 = vmatprep.subr.mxu0 0.0
  %723 = vmatpush2.msra.mxu0 0.0
  %724 = vmatprep.subr.mxu0 0.0
  %725 = vmatpush2.msra.mxu0 0.0
  %726 = vmatprep.subr.mxu0 0.0
  %727 = vmatpush2.msra.mxu0 0.0
  %728 = vmatprep.subr.mxu0 0.0
  %729 = vmatpush2.msra.mxu0 0.0
  %730 = vmatprep.subr.mxu0 0.0
  %731 = vmatpush2.msra.mxu0 0.0
  %732 = vmatprep.subr.mxu0 0.0
  %733 = vmatpush2.msra.mxu0 0.0
  %734 = vmatprep.subr.mxu0 0.0
  %735 = vmatpush2.msra.mxu0 0.0
  %736 = vmatprep.subr.mxu0 0.0
  %737 = vmatpush2.msra.mxu0 0.0
  %738 = vmatprep.subr.mxu0 0.0
  %739 = vmatpush2.msra.mxu0 0.0
  %740 = vmatprep.subr.mxu0 0.0
  %741 = vmatpush2.msra.mxu0 0.0
  %742 = vmatprep.mubr.f32.mxu0 0.0
  %743 = vmatmul.mubr.f32.gmra.mxu0 %v676
  %v744 = vpop.f32.mrf.mxu0
  %v745 = vadd.f32 0.0, %v744
  %v746 = vpop.f32.mrf.mxu0
  %747 = vdwg.mxu0
  %v748 = vlaneseq
  %v749 = vshrl.u32 %v748, 7
  %v750 = vsub.s32 0, %v749
  %v751 = vrot.slane %v745, %v750
  %v752 = vsub.f32 %v579, %v751
  %v753 = vsub.f32 %v580, %v751
  %v754 = vmul.f32 %v752, %v752
  %v755 = vmul.f32 %v753, %v753
  %v756 = vsel %vm581, %v754, 0.0
  %v757 = vsel %vm581, %v755, 0.0
  %v758 = vadd.f32 %v756, %v757
  %v759 = vrot.slane %v758, 4
  %v760 = vadd.f32 %v758, %v759
  %v761 = vrot.slane %v760, 2
  %v762 = vadd.f32 %v760, %v761
  %v763 = vrot.slane %v762, 1
  %v764 = vadd.f32 %v762, %v763
  %v766 = vsel %vm581, %v764, 0
  %768 = vmatprep.subr.mxu0 0.0
  %769 = vmatpush1.msra.mxu0 0.0
  %770 = vmatprep.subr.mxu0 0.0
  %771 = vmatpush1.msra.mxu0 0.0
  %772 = vmatprep.subr.mxu0 0.0
  %773 = vmatpush1.msra.mxu0 0.0
  %774 = vmatprep.subr.mxu0 0.0
  %775 = vmatpush1.msra.mxu0 0.0
  %776 = vmatprep.subr.mxu0 0.0
  %777 = vmatpush1.msra.mxu0 0.0
  %778 = vmatprep.subr.mxu0 0.0
  %779 = vmatpush1.msra.mxu0 0.0
  %780 = vmatprep.subr.mxu0 0.0
  %781 = vmatpush1.msra.mxu0 0.0
  %782 = vmatprep.subr.mxu0 0.0
  %783 = vmatpush1.msra.mxu0 0.0
  %784 = vmatprep.subr.mxu0 0.0
  %785 = vmatpush1.msra.mxu0 %v598
  %786 = vmatprep.subr.mxu0 0.0
  %787 = vmatpush1.msra.mxu0 %v597
  %788 = vmatprep.subr.mxu0 0.0
  %789 = vmatpush1.msra.mxu0 %v596
  %790 = vmatprep.subr.mxu0 0.0
  %791 = vmatpush1.msra.mxu0 %v595
  %792 = vmatprep.subr.mxu0 0.0
  %793 = vmatpush1.msra.mxu0 %v594
  %794 = vmatprep.subr.mxu0 0.0
  %795 = vmatpush1.msra.mxu0 %v593
  %796 = vmatprep.subr.mxu0 0.0
  %797 = vmatpush1.msra.mxu0 %v592
  %798 = vmatprep.subr.mxu0 0.0
  %799 = vmatpush1.msra.mxu0 %v591
  %800 = vmatprep.subr.mxu0 0.0
  %801 = vmatpush2.msra.mxu0 0.0
  %802 = vmatprep.subr.mxu0 0.0
  %803 = vmatpush2.msra.mxu0 0.0
  %804 = vmatprep.subr.mxu0 0.0
  %805 = vmatpush2.msra.mxu0 0.0
  %806 = vmatprep.subr.mxu0 0.0
  %807 = vmatpush2.msra.mxu0 0.0
  %808 = vmatprep.subr.mxu0 0.0
  %809 = vmatpush2.msra.mxu0 0.0
  %810 = vmatprep.subr.mxu0 0.0
  %811 = vmatpush2.msra.mxu0 0.0
  %812 = vmatprep.subr.mxu0 0.0
  %813 = vmatpush2.msra.mxu0 0.0
  %814 = vmatprep.subr.mxu0 0.0
  %815 = vmatpush2.msra.mxu0 0.0
  %816 = vmatprep.subr.mxu0 0.0
  %817 = vmatpush2.msra.mxu0 0.0
  %818 = vmatprep.subr.mxu0 0.0
  %819 = vmatpush2.msra.mxu0 0.0
  %820 = vmatprep.subr.mxu0 0.0
  %821 = vmatpush2.msra.mxu0 0.0
  %822 = vmatprep.subr.mxu0 0.0
  %823 = vmatpush2.msra.mxu0 0.0
  %824 = vmatprep.subr.mxu0 0.0
  %825 = vmatpush2.msra.mxu0 0.0
  %826 = vmatprep.subr.mxu0 0.0
  %827 = vmatpush2.msra.mxu0 0.0
  %828 = vmatprep.subr.mxu0 0.0
  %829 = vmatpush2.msra.mxu0 0.0
  %830 = vmatprep.subr.mxu0 0.0
  %831 = vmatpush2.msra.mxu0 0.0
  %832 = vmatprep.mubr.f32.mxu0 0.0
  %833 = vmatmul.mubr.f32.gmra.mxu0 %v766
  %v834 = vpop.f32.mrf.mxu0
  %v835 = vadd.f32 0.0, %v834
  %v836 = vpop.f32.mrf.mxu0
  %837 = vdwg.mxu0
  %v838 = vmul.f32 %v835, 0.0078125
  %v839 = vld [vmem:[%s3] sm:$0x1]
  %v840 = vadd.f32 %v838, 1e-05
  %v841 = vrsqrt.pop %v840
  %v842 = vmul.f32 %v839, %v841
  %v844 = vsel %vm674, %v842, 0
  %846 = vmatprep.subr.mxu0 0.0
  %847 = vmatpush1.msra.mxu0 0.0
  %848 = vmatprep.subr.mxu0 0.0
  %849 = vmatpush1.msra.mxu0 0.0
  %850 = vmatprep.subr.mxu0 0.0
  %851 = vmatpush1.msra.mxu0 0.0
  %852 = vmatprep.subr.mxu0 0.0
  %853 = vmatpush1.msra.mxu0 0.0
  %854 = vmatprep.subr.mxu0 0.0
  %855 = vmatpush1.msra.mxu0 0.0
  %856 = vmatprep.subr.mxu0 0.0
  %857 = vmatpush1.msra.mxu0 0.0
  %858 = vmatprep.subr.mxu0 0.0
  %859 = vmatpush1.msra.mxu0 0.0
  %860 = vmatprep.subr.mxu0 0.0
  %861 = vmatpush1.msra.mxu0 0.0
  %862 = vmatprep.subr.mxu0 0.0
  %863 = vmatpush1.msra.mxu0 0.0
  %864 = vmatprep.subr.mxu0 0.0
  %865 = vmatpush1.msra.mxu0 0.0
  %866 = vmatprep.subr.mxu0 0.0
  %867 = vmatpush1.msra.mxu0 0.0
  %868 = vmatprep.subr.mxu0 0.0
  %869 = vmatpush1.msra.mxu0 0.0
  %870 = vmatprep.subr.mxu0 0.0
  %871 = vmatpush1.msra.mxu0 0.0
  %872 = vmatprep.subr.mxu0 0.0
  %873 = vmatpush1.msra.mxu0 0.0
  %874 = vmatprep.subr.mxu0 0.0
  %875 = vmatpush1.msra.mxu0 0.0
  %876 = vmatprep.subr.mxu0 0.0
  %877 = vmatpush1.msra.mxu0 %v673
  %878 = vmatprep.subr.mxu0 0.0
  %879 = vmatpush2.msra.mxu0 0.0
  %880 = vmatprep.subr.mxu0 0.0
  %881 = vmatpush2.msra.mxu0 0.0
  %882 = vmatprep.subr.mxu0 0.0
  %883 = vmatpush2.msra.mxu0 0.0
  %884 = vmatprep.subr.mxu0 0.0
  %885 = vmatpush2.msra.mxu0 0.0
  %886 = vmatprep.subr.mxu0 0.0
  %887 = vmatpush2.msra.mxu0 0.0
  %888 = vmatprep.subr.mxu0 0.0
  %889 = vmatpush2.msra.mxu0 0.0
  %890 = vmatprep.subr.mxu0 0.0
  %891 = vmatpush2.msra.mxu0 0.0
  %892 = vmatprep.subr.mxu0 0.0
  %893 = vmatpush2.msra.mxu0 0.0
  %894 = vmatprep.subr.mxu0 0.0
  %895 = vmatpush2.msra.mxu0 0.0
  %896 = vmatprep.subr.mxu0 0.0
  %897 = vmatpush2.msra.mxu0 0.0
  %898 = vmatprep.subr.mxu0 0.0
  %899 = vmatpush2.msra.mxu0 0.0
  %900 = vmatprep.subr.mxu0 0.0
  %901 = vmatpush2.msra.mxu0 0.0
  %902 = vmatprep.subr.mxu0 0.0
  %903 = vmatpush2.msra.mxu0 0.0
  %904 = vmatprep.subr.mxu0 0.0
  %905 = vmatpush2.msra.mxu0 0.0
  %906 = vmatprep.subr.mxu0 0.0
  %907 = vmatpush2.msra.mxu0 0.0
  %908 = vmatprep.subr.mxu0 0.0
  %909 = vmatpush2.msra.mxu0 0.0
  %910 = vmatprep.mubr.f32.mxu0 0.0
  %911 = vmatmul.mubr.f32.gmra.mxu0 %v844
  %v912 = vpop.f32.mrf.mxu0
  %v913 = vadd.f32 0.0, %v912
  %v914 = vpop.f32.mrf.mxu0
  %915 = vdwg.mxu0
  %v916 = vlaneseq
  %v917 = vshrl.u32 %v916, 7
  %v918 = vsub.s32 0, %v917
  %v919 = vrot.slane %v913, %v918
  %v920 = vmul.f32 %v752, %v919
  %v921 = vmul.f32 %v753, %v919
  %v922 = vld [vmem:[%s3 + $0x1] sm:$0x1]
  %v924 = vsel %vm674, %v922, 0
  %926 = vmatprep.subr.mxu0 0.0
  %927 = vmatpush1.msra.mxu0 0.0
  %928 = vmatprep.subr.mxu0 0.0
  %929 = vmatpush1.msra.mxu0 0.0
  %930 = vmatprep.subr.mxu0 0.0
  %931 = vmatpush1.msra.mxu0 0.0
  %932 = vmatprep.subr.mxu0 0.0
  %933 = vmatpush1.msra.mxu0 0.0
  %934 = vmatprep.subr.mxu0 0.0
  %935 = vmatpush1.msra.mxu0 0.0
  %936 = vmatprep.subr.mxu0 0.0
  %937 = vmatpush1.msra.mxu0 0.0
  %938 = vmatprep.subr.mxu0 0.0
  %939 = vmatpush1.msra.mxu0 0.0
  %940 = vmatprep.subr.mxu0 0.0
  %941 = vmatpush1.msra.mxu0 0.0
  %942 = vmatprep.subr.mxu0 0.0
  %943 = vmatpush1.msra.mxu0 0.0
  %944 = vmatprep.subr.mxu0 0.0
  %945 = vmatpush1.msra.mxu0 0.0
  %946 = vmatprep.subr.mxu0 0.0
  %947 = vmatpush1.msra.mxu0 0.0
  %948 = vmatprep.subr.mxu0 0.0
  %949 = vmatpush1.msra.mxu0 0.0
  %950 = vmatprep.subr.mxu0 0.0
  %951 = vmatpush1.msra.mxu0 0.0
  %952 = vmatprep.subr.mxu0 0.0
  %953 = vmatpush1.msra.mxu0 0.0
  %954 = vmatprep.subr.mxu0 0.0
  %955 = vmatpush1.msra.mxu0 0.0
  %956 = vmatprep.subr.mxu0 0.0
  %957 = vmatpush1.msra.mxu0 %v673
  %958 = vmatprep.subr.mxu0 0.0
  %959 = vmatpush2.msra.mxu0 0.0
  %960 = vmatprep.subr.mxu0 0.0
  %961 = vmatpush2.msra.mxu0 0.0
  %962 = vmatprep.subr.mxu0 0.0
  %963 = vmatpush2.msra.mxu0 0.0
  %964 = vmatprep.subr.mxu0 0.0
  %965 = vmatpush2.msra.mxu0 0.0
  %966 = vmatprep.subr.mxu0 0.0
  %967 = vmatpush2.msra.mxu0 0.0
  %968 = vmatprep.subr.mxu0 0.0
  %969 = vmatpush2.msra.mxu0 0.0
  %970 = vmatprep.subr.mxu0 0.0
  %971 = vmatpush2.msra.mxu0 0.0
  %972 = vmatprep.subr.mxu0 0.0
  %973 = vmatpush2.msra.mxu0 0.0
  %974 = vmatprep.subr.mxu0 0.0
  %975 = vmatpush2.msra.mxu0 0.0
  %976 = vmatprep.subr.mxu0 0.0
  %977 = vmatpush2.msra.mxu0 0.0
  %978 = vmatprep.subr.mxu0 0.0
  %979 = vmatpush2.msra.mxu0 0.0
  %980 = vmatprep.subr.mxu0 0.0
  %981 = vmatpush2.msra.mxu0 0.0
  %982 = vmatprep.subr.mxu0 0.0
  %983 = vmatpush2.msra.mxu0 0.0
  %984 = vmatprep.subr.mxu0 0.0
  %985 = vmatpush2.msra.mxu0 0.0
  %986 = vmatprep.subr.mxu0 0.0
  %987 = vmatpush2.msra.mxu0 0.0
  %988 = vmatprep.subr.mxu0 0.0
  %989 = vmatpush2.msra.mxu0 0.0
  %990 = vmatprep.mubr.f32.mxu0 0.0
  %991 = vmatmul.mubr.f32.gmra.mxu0 %v924
  %v992 = vpop.f32.mrf.mxu0
  %v993 = vadd.f32 0.0, %v992
  %v994 = vpop.f32.mrf.mxu0
  %995 = vdwg.mxu0
  %v996 = vlaneseq
  %v997 = vshrl.u32 %v996, 7
  %v998 = vsub.s32 0, %v997
  %v999 = vrot.slane %v993, %v998
  %v1000 = vadd.f32 %v920, %v999
  %v1001 = vadd.f32 %v921, %v999
  %vm1002 = vcmp.gt.f32.partialorder %v1000, 0.0
  %vm1003 = vcmp.gt.f32.partialorder %v1001, 0.0
  %v1004 = vmul.f32 %v1000, 0.2
  %v1005 = vmul.f32 %v1001, 0.2
  %v1006 = vsel %vm1002, %v1000, %v1004
  %v1007 = vsel %vm1003, %v1001, %v1005
  %v1008 = vpack.c.bf16 %v1007, %v1006
  %v1009 = vld [vmem:[%s7] sm:$0xf]
  %v1010 = vld [vmem:[%s7 + $0x4] sm:$0xf]
  %v1011 = vld [vmem:[%s7 + $0x8] sm:$0xf]
  %v1012 = vld [vmem:[%s7 + $0xc] sm:$0xf]
  %v1013 = vld [vmem:[%s7 + $0x10] sm:$0xf]
  %v1014 = vld [vmem:[%s7 + $0x14] sm:$0xf]
  %v1015 = vld [vmem:[%s7 + $0x18] sm:$0xf]
  %v1016 = vld [vmem:[%s7 + $0x1c] sm:$0xf]
  %v1025 = vunpack.c.l.b16 %v1009
  %v1026 = vunpack.c.l.b16 %v1010
  %v1027 = vunpack.c.l.b16 %v1011
  %v1028 = vunpack.c.l.b16 %v1012
  %v1029 = vunpack.c.l.b16 %v1013
  %v1030 = vunpack.c.l.b16 %v1014
  %v1031 = vunpack.c.l.b16 %v1015
  %v1032 = vunpack.c.l.b16 %v1016
  %v1033 = vpack.c.b16 %v1026, %v1025
  %v1034 = vpack.c.b16 %v1028, %v1027
  %v1035 = vpack.c.b16 %v1030, %v1029
  %v1036 = vpack.c.b16 %v1032, %v1031
  %v1042 = vsel %vm581, %v1008, 0
  %1044 = vmatprep.subr.bf16.mxu0 0
  %1045 = vmatpush1.bf16.msra.mxu0 0
  %1046 = vmatprep.subr.bf16.mxu0 0
  %1047 = vmatpush1.bf16.msra.mxu0 0
  %1048 = vmatprep.subr.bf16.mxu0 0
  %1049 = vmatpush1.bf16.msra.mxu0 0
  %1050 = vmatprep.subr.bf16.mxu0 0
  %1051 = vmatpush1.bf16.msra.mxu0 0
  %1052 = vmatprep.subr.bf16.mxu0 0
  %1053 = vmatpush1.bf16.msra.mxu0 %v1036
  %1054 = vmatprep.subr.bf16.mxu0 0
  %1055 = vmatpush1.bf16.msra.mxu0 %v1035
  %1056 = vmatprep.subr.bf16.mxu0 0
  %1057 = vmatpush1.bf16.msra.mxu0 %v1034
  %1058 = vmatprep.subr.bf16.mxu0 0
  %1059 = vmatpush1.bf16.msra.mxu0 %v1033
  %1060 = vmatprep.subr.bf16.mxu0 0
  %1061 = vmatpush2.bf16.msra.mxu0 0
  %1062 = vmatprep.subr.bf16.mxu0 0
  %1063 = vmatpush2.bf16.msra.mxu0 0
  %1064 = vmatprep.subr.bf16.mxu0 0
  %1065 = vmatpush2.bf16.msra.mxu0 0
  %1066 = vmatprep.subr.bf16.mxu0 0
  %1067 = vmatpush2.bf16.msra.mxu0 0
  %1068 = vmatprep.subr.bf16.mxu0 0
  %1069 = vmatpush2.bf16.msra.mxu0 0
  %1070 = vmatprep.subr.bf16.mxu0 0
  %1071 = vmatpush2.bf16.msra.mxu0 0
  %1072 = vmatprep.subr.bf16.mxu0 0
  %1073 = vmatpush2.bf16.msra.mxu0 0
  %1074 = vmatprep.subr.bf16.mxu0 0
  %1075 = vmatpush2.bf16.msra.mxu0 0
  %1076 = vmatprep.mubr.bf16.mxu0 0
  %1077 = vmatmul.mubr.bf16.gmra.mxu0 %v1042
  %v1078 = vpop.f32.mrf.mxu0
  %v1079 = vadd.f32 0.0, %v1078
  %v1080 = vpop.f32.mrf.mxu0
  %v1081 = vpop.f32.mrf.mxu0
  %v1082 = vadd.f32 0.0, %v1081
  %v1083 = vpop.f32.mrf.mxu0
  %1084 = vdwg.mxu0
  %v1085 = vld [vmem:[%s6] sm:$0xf]
  %v1086 = vpack.c.bf16 %v1082, %v1079
  %s1087 = scalar_lea.vmem %s7, 32
  %v1088 = vld [vmem:[%s1087] sm:$0xf]
  %v1089 = vld [vmem:[%s1087 + $0x4] sm:$0xf]
  %v1090 = vld [vmem:[%s1087 + $0x8] sm:$0xf]
  %v1091 = vld [vmem:[%s1087 + $0xc] sm:$0xf]
  %v1092 = vld [vmem:[%s1087 + $0x10] sm:$0xf]
  %v1093 = vld [vmem:[%s1087 + $0x14] sm:$0xf]
  %v1094 = vld [vmem:[%s1087 + $0x18] sm:$0xf]
  %v1095 = vld [vmem:[%s1087 + $0x1c] sm:$0xf]
  %v1104 = vunpack.c.l.b16 %v1088
  %v1105 = vunpack.c.l.b16 %v1089
  %v1106 = vunpack.c.l.b16 %v1090
  %v1107 = vunpack.c.l.b16 %v1091
  %v1108 = vunpack.c.l.b16 %v1092
  %v1109 = vunpack.c.l.b16 %v1093
  %v1110 = vunpack.c.l.b16 %v1094
  %v1111 = vunpack.c.l.b16 %v1095
  %v1112 = vpack.c.b16 %v1105, %v1104
  %v1113 = vpack.c.b16 %v1107, %v1106
  %v1114 = vpack.c.b16 %v1109, %v1108
  %v1115 = vpack.c.b16 %v1111, %v1110
  %1120 = vmatprep.subr.bf16.mxu0 0
  %1121 = vmatpush1.bf16.msra.mxu0 0
  %1122 = vmatprep.subr.bf16.mxu0 0
  %1123 = vmatpush1.bf16.msra.mxu0 0
  %1124 = vmatprep.subr.bf16.mxu0 0
  %1125 = vmatpush1.bf16.msra.mxu0 0
  %1126 = vmatprep.subr.bf16.mxu0 0
  %1127 = vmatpush1.bf16.msra.mxu0 0
  %1128 = vmatprep.subr.bf16.mxu0 0
  %1129 = vmatpush1.bf16.msra.mxu0 %v1115
  %1130 = vmatprep.subr.bf16.mxu0 0
  %1131 = vmatpush1.bf16.msra.mxu0 %v1114
  %1132 = vmatprep.subr.bf16.mxu0 0
  %1133 = vmatpush1.bf16.msra.mxu0 %v1113
  %1134 = vmatprep.subr.bf16.mxu0 0
  %1135 = vmatpush1.bf16.msra.mxu0 %v1112
  %1136 = vmatprep.subr.bf16.mxu0 0
  %1137 = vmatpush2.bf16.msra.mxu0 0
  %1138 = vmatprep.subr.bf16.mxu0 0
  %1139 = vmatpush2.bf16.msra.mxu0 0
  %1140 = vmatprep.subr.bf16.mxu0 0
  %1141 = vmatpush2.bf16.msra.mxu0 0
  %1142 = vmatprep.subr.bf16.mxu0 0
  %1143 = vmatpush2.bf16.msra.mxu0 0
  %1144 = vmatprep.subr.bf16.mxu0 0
  %1145 = vmatpush2.bf16.msra.mxu0 0
  %1146 = vmatprep.subr.bf16.mxu0 0
  %1147 = vmatpush2.bf16.msra.mxu0 0
  %1148 = vmatprep.subr.bf16.mxu0 0
  %1149 = vmatpush2.bf16.msra.mxu0 0
  %1150 = vmatprep.subr.bf16.mxu0 0
  %1151 = vmatpush2.bf16.msra.mxu0 0
  %1152 = vmatprep.mubr.bf16.mxu0 0
  %1153 = vmatmul.mubr.bf16.gmra.mxu0 %v1042
  %v1154 = vpop.f32.mrf.mxu0
  %v1155 = vadd.f32 0.0, %v1154
  %v1156 = vpop.f32.mrf.mxu0
  %v1157 = vpop.f32.mrf.mxu0
  %v1158 = vadd.f32 0.0, %v1157
  %v1159 = vpop.f32.mrf.mxu0
  %1160 = vdwg.mxu0
  %s1161 = scalar_lea.vmem %s6, 4
  %v1162 = vld [vmem:[%s1161] sm:$0xf]
  %v1163 = vpack.c.bf16 %v1158, %v1155
  %vm1164 = vcmask 130048
  %v1166 = vsel %vm1164, %v1162, 0
  %1168 = vmatprep.subr.bf16.mxu0 0
  %1169 = vmatpush1.bf16.msra.mxu0 0
  %1170 = vmatprep.subr.bf16.mxu0 0
  %1171 = vmatpush1.bf16.msra.mxu0 0
  %1172 = vmatprep.subr.bf16.mxu0 0
  %1173 = vmatpush1.bf16.msra.mxu0 0
  %1174 = vmatprep.subr.bf16.mxu0 0
  %1175 = vmatpush1.bf16.msra.mxu0 0
  %1176 = vmatprep.subr.bf16.mxu0 0
  %1177 = vmatpush1.bf16.msra.mxu0 0
  %1178 = vmatprep.subr.bf16.mxu0 0
  %1179 = vmatpush1.bf16.msra.mxu0 0
  %1180 = vmatprep.subr.bf16.mxu0 0
  %1181 = vmatpush1.bf16.msra.mxu0 0
  %1182 = vmatprep.subr.bf16.mxu0 0
  %1183 = vmatpush1.bf16.msra.mxu0 %v1163
  %1184 = vmatprep.subr.bf16.mxu0 0
  %1185 = vmatpush2.bf16.msra.mxu0 0
  %1186 = vmatprep.subr.bf16.mxu0 0
  %1187 = vmatpush2.bf16.msra.mxu0 0
  %1188 = vmatprep.subr.bf16.mxu0 0
  %1189 = vmatpush2.bf16.msra.mxu0 0
  %1190 = vmatprep.subr.bf16.mxu0 0
  %1191 = vmatpush2.bf16.msra.mxu0 0
  %1192 = vmatprep.subr.bf16.mxu0 0
  %1193 = vmatpush2.bf16.msra.mxu0 0
  %1194 = vmatprep.subr.bf16.mxu0 0
  %1195 = vmatpush2.bf16.msra.mxu0 0
  %1196 = vmatprep.subr.bf16.mxu0 0
  %1197 = vmatpush2.bf16.msra.mxu0 0
  %1198 = vmatprep.subr.bf16.mxu0 0
  %1199 = vmatpush2.bf16.msra.mxu0 0
  %1200 = vmatprep.mubr.bf16.mxu0 0
  %1201 = vmatmul.mubr.bf16.gmra.mxu0 %v1166
  %v1202 = vpop.f32.mrf.mxu0
  %v1203 = vadd.f32 0.0, %v1202
  %v1204 = vpop.f32.mrf.mxu0
  %v1205 = vpop.f32.mrf.mxu0
  %v1206 = vpop.f32.mrf.mxu0
  %1207 = vdwg.mxu0
  %v1209 = vsel %vm1164, %v1085, 0
  %1211 = vmatprep.subr.bf16.mxu0 0
  %1212 = vmatpush1.bf16.msra.mxu0 0
  %1213 = vmatprep.subr.bf16.mxu0 0
  %1214 = vmatpush1.bf16.msra.mxu0 0
  %1215 = vmatprep.subr.bf16.mxu0 0
  %1216 = vmatpush1.bf16.msra.mxu0 0
  %1217 = vmatprep.subr.bf16.mxu0 0
  %1218 = vmatpush1.bf16.msra.mxu0 0
  %1219 = vmatprep.subr.bf16.mxu0 0
  %1220 = vmatpush1.bf16.msra.mxu0 0
  %1221 = vmatprep.subr.bf16.mxu0 0
  %1222 = vmatpush1.bf16.msra.mxu0 0
  %1223 = vmatprep.subr.bf16.mxu0 0
  %1224 = vmatpush1.bf16.msra.mxu0 0
  %1225 = vmatprep.subr.bf16.mxu0 0
  %1226 = vmatpush1.bf16.msra.mxu0 %v1086
  %1227 = vmatprep.subr.bf16.mxu0 0
  %1228 = vmatpush2.bf16.msra.mxu0 0
  %1229 = vmatprep.subr.bf16.mxu0 0
  %1230 = vmatpush2.bf16.msra.mxu0 0
  %1231 = vmatprep.subr.bf16.mxu0 0
  %1232 = vmatpush2.bf16.msra.mxu0 0
  %1233 = vmatprep.subr.bf16.mxu0 0
  %1234 = vmatpush2.bf16.msra.mxu0 0
  %1235 = vmatprep.subr.bf16.mxu0 0
  %1236 = vmatpush2.bf16.msra.mxu0 0
  %1237 = vmatprep.subr.bf16.mxu0 0
  %1238 = vmatpush2.bf16.msra.mxu0 0
  %1239 = vmatprep.subr.bf16.mxu0 0
  %1240 = vmatpush2.bf16.msra.mxu0 0
  %1241 = vmatprep.subr.bf16.mxu0 0
  %1242 = vmatpush2.bf16.msra.mxu0 0
  %1243 = vmatprep.mubr.bf16.mxu0 0
  %1244 = vmatmul.mubr.bf16.gmra.mxu0 %v1209
  %v1245 = vpop.f32.mrf.mxu0
  %v1246 = vadd.f32 %v1203, %v1245
  %v1247 = vpop.f32.mrf.mxu0
  %v1248 = vpop.f32.mrf.mxu0
  %v1249 = vpop.f32.mrf.mxu0
  %1250 = vdwg.mxu0
  %s1251 = scalar_lea.vmem %s7, 64
  %v1252 = vld [vmem:[%s1251] sm:$0xf]
  %v1253 = vld [vmem:[%s1251 + $0x4] sm:$0xf]
  %v1254 = vld [vmem:[%s1251 + $0x8] sm:$0xf]
  %v1255 = vld [vmem:[%s1251 + $0xc] sm:$0xf]
  %v1256 = vld [vmem:[%s1251 + $0x10] sm:$0xf]
  %v1257 = vld [vmem:[%s1251 + $0x14] sm:$0xf]
  %v1258 = vld [vmem:[%s1251 + $0x18] sm:$0xf]
  %v1259 = vld [vmem:[%s1251 + $0x1c] sm:$0xf]
  %v1268 = vunpack.c.l.b16 %v1252
  %v1269 = vunpack.c.l.b16 %v1253
  %v1270 = vunpack.c.l.b16 %v1254
  %v1271 = vunpack.c.l.b16 %v1255
  %v1272 = vunpack.c.l.b16 %v1256
  %v1273 = vunpack.c.l.b16 %v1257
  %v1274 = vunpack.c.l.b16 %v1258
  %v1275 = vunpack.c.l.b16 %v1259
  %v1276 = vpack.c.b16 %v1269, %v1268
  %v1277 = vpack.c.b16 %v1271, %v1270
  %v1278 = vpack.c.b16 %v1273, %v1272
  %v1279 = vpack.c.b16 %v1275, %v1274
  %1284 = vmatprep.subr.bf16.mxu0 0
  %1285 = vmatpush1.bf16.msra.mxu0 0
  %1286 = vmatprep.subr.bf16.mxu0 0
  %1287 = vmatpush1.bf16.msra.mxu0 0
  %1288 = vmatprep.subr.bf16.mxu0 0
  %1289 = vmatpush1.bf16.msra.mxu0 0
  %1290 = vmatprep.subr.bf16.mxu0 0
  %1291 = vmatpush1.bf16.msra.mxu0 0
  %1292 = vmatprep.subr.bf16.mxu0 0
  %1293 = vmatpush1.bf16.msra.mxu0 %v1279
  %1294 = vmatprep.subr.bf16.mxu0 0
  %1295 = vmatpush1.bf16.msra.mxu0 %v1278
  %1296 = vmatprep.subr.bf16.mxu0 0
  %1297 = vmatpush1.bf16.msra.mxu0 %v1277
  %1298 = vmatprep.subr.bf16.mxu0 0
  %1299 = vmatpush1.bf16.msra.mxu0 %v1276
  %1300 = vmatprep.subr.bf16.mxu0 0
  %1301 = vmatpush2.bf16.msra.mxu0 0
  %1302 = vmatprep.subr.bf16.mxu0 0
  %1303 = vmatpush2.bf16.msra.mxu0 0
  %1304 = vmatprep.subr.bf16.mxu0 0
  %1305 = vmatpush2.bf16.msra.mxu0 0
  %1306 = vmatprep.subr.bf16.mxu0 0
  %1307 = vmatpush2.bf16.msra.mxu0 0
  %1308 = vmatprep.subr.bf16.mxu0 0
  %1309 = vmatpush2.bf16.msra.mxu0 0
  %1310 = vmatprep.subr.bf16.mxu0 0
  %1311 = vmatpush2.bf16.msra.mxu0 0
  %1312 = vmatprep.subr.bf16.mxu0 0
  %1313 = vmatpush2.bf16.msra.mxu0 0
  %1314 = vmatprep.subr.bf16.mxu0 0
  %1315 = vmatpush2.bf16.msra.mxu0 0
  %1316 = vmatprep.mubr.bf16.mxu0 0
  %1317 = vmatmul.mubr.bf16.gmra.mxu0 %v1042
  %v1318 = vpop.f32.mrf.mxu0
  %v1319 = vadd.f32 0.0, %v1318
  %v1320 = vpop.f32.mrf.mxu0
  %v1321 = vpop.f32.mrf.mxu0
  %v1322 = vadd.f32 0.0, %v1321
  %v1323 = vpop.f32.mrf.mxu0
  %1324 = vdwg.mxu0
  %s1325 = scalar_lea.vmem %s6, 8
  %v1326 = vld [vmem:[%s1325] sm:$0xf]
  %v1327 = vpack.c.bf16 %v1322, %v1319
  %v1329 = vsel %vm1164, %v1326, 0
  %1331 = vmatprep.subr.bf16.mxu0 0
  %1332 = vmatpush1.bf16.msra.mxu0 0
  %1333 = vmatprep.subr.bf16.mxu0 0
  %1334 = vmatpush1.bf16.msra.mxu0 0
  %1335 = vmatprep.subr.bf16.mxu0 0
  %1336 = vmatpush1.bf16.msra.mxu0 0
  %1337 = vmatprep.subr.bf16.mxu0 0
  %1338 = vmatpush1.bf16.msra.mxu0 0
  %1339 = vmatprep.subr.bf16.mxu0 0
  %1340 = vmatpush1.bf16.msra.mxu0 0
  %1341 = vmatprep.subr.bf16.mxu0 0
  %1342 = vmatpush1.bf16.msra.mxu0 0
  %1343 = vmatprep.subr.bf16.mxu0 0
  %1344 = vmatpush1.bf16.msra.mxu0 0
  %1345 = vmatprep.subr.bf16.mxu0 0
  %1346 = vmatpush1.bf16.msra.mxu0 %v1327
  %1347 = vmatprep.subr.bf16.mxu0 0
  %1348 = vmatpush2.bf16.msra.mxu0 0
  %1349 = vmatprep.subr.bf16.mxu0 0
  %1350 = vmatpush2.bf16.msra.mxu0 0
  %1351 = vmatprep.subr.bf16.mxu0 0
  %1352 = vmatpush2.bf16.msra.mxu0 0
  %1353 = vmatprep.subr.bf16.mxu0 0
  %1354 = vmatpush2.bf16.msra.mxu0 0
  %1355 = vmatprep.subr.bf16.mxu0 0
  %1356 = vmatpush2.bf16.msra.mxu0 0
  %1357 = vmatprep.subr.bf16.mxu0 0
  %1358 = vmatpush2.bf16.msra.mxu0 0
  %1359 = vmatprep.subr.bf16.mxu0 0
  %1360 = vmatpush2.bf16.msra.mxu0 0
  %1361 = vmatprep.subr.bf16.mxu0 0
  %1362 = vmatpush2.bf16.msra.mxu0 0
  %1363 = vmatprep.mubr.bf16.mxu0 0
  %1364 = vmatmul.mubr.bf16.gmra.mxu0 %v1329
  %v1365 = vpop.f32.mrf.mxu0
  %v1366 = vadd.f32 0.0, %v1365
  %v1367 = vpop.f32.mrf.mxu0
  %v1368 = vpop.f32.mrf.mxu0
  %v1369 = vpop.f32.mrf.mxu0
  %1370 = vdwg.mxu0
  %v1371 = vadd.f32 %v1246, %v1366
  %s1372 = scalar_lea.vmem %s7, 96
  %v1373 = vld [vmem:[%s1372] sm:$0xf]
  %v1374 = vld [vmem:[%s1372 + $0x4] sm:$0xf]
  %v1375 = vld [vmem:[%s1372 + $0x8] sm:$0xf]
  %v1376 = vld [vmem:[%s1372 + $0xc] sm:$0xf]
  %v1377 = vld [vmem:[%s1372 + $0x10] sm:$0xf]
  %v1378 = vld [vmem:[%s1372 + $0x14] sm:$0xf]
  %v1379 = vld [vmem:[%s1372 + $0x18] sm:$0xf]
  %v1380 = vld [vmem:[%s1372 + $0x1c] sm:$0xf]
  %v1389 = vunpack.c.l.b16 %v1373
  %v1390 = vunpack.c.l.b16 %v1374
  %v1391 = vunpack.c.l.b16 %v1375
  %v1392 = vunpack.c.l.b16 %v1376
  %v1393 = vunpack.c.l.b16 %v1377
  %v1394 = vunpack.c.l.b16 %v1378
  %v1395 = vunpack.c.l.b16 %v1379
  %v1396 = vunpack.c.l.b16 %v1380
  %v1397 = vpack.c.b16 %v1390, %v1389
  %v1398 = vpack.c.b16 %v1392, %v1391
  %v1399 = vpack.c.b16 %v1394, %v1393
  %v1400 = vpack.c.b16 %v1396, %v1395
  %1405 = vmatprep.subr.bf16.mxu0 0
  %1406 = vmatpush1.bf16.msra.mxu0 0
  %1407 = vmatprep.subr.bf16.mxu0 0
  %1408 = vmatpush1.bf16.msra.mxu0 0
  %1409 = vmatprep.subr.bf16.mxu0 0
  %1410 = vmatpush1.bf16.msra.mxu0 0
  %1411 = vmatprep.subr.bf16.mxu0 0
  %1412 = vmatpush1.bf16.msra.mxu0 0
  %1413 = vmatprep.subr.bf16.mxu0 0
  %1414 = vmatpush1.bf16.msra.mxu0 %v1400
  %1415 = vmatprep.subr.bf16.mxu0 0
  %1416 = vmatpush1.bf16.msra.mxu0 %v1399
  %1417 = vmatprep.subr.bf16.mxu0 0
  %1418 = vmatpush1.bf16.msra.mxu0 %v1398
  %1419 = vmatprep.subr.bf16.mxu0 0
  %1420 = vmatpush1.bf16.msra.mxu0 %v1397
  %1421 = vmatprep.subr.bf16.mxu0 0
  %1422 = vmatpush2.bf16.msra.mxu0 0
  %1423 = vmatprep.subr.bf16.mxu0 0
  %1424 = vmatpush2.bf16.msra.mxu0 0
  %1425 = vmatprep.subr.bf16.mxu0 0
  %1426 = vmatpush2.bf16.msra.mxu0 0
  %1427 = vmatprep.subr.bf16.mxu0 0
  %1428 = vmatpush2.bf16.msra.mxu0 0
  %1429 = vmatprep.subr.bf16.mxu0 0
  %1430 = vmatpush2.bf16.msra.mxu0 0
  %1431 = vmatprep.subr.bf16.mxu0 0
  %1432 = vmatpush2.bf16.msra.mxu0 0
  %1433 = vmatprep.subr.bf16.mxu0 0
  %1434 = vmatpush2.bf16.msra.mxu0 0
  %1435 = vmatprep.subr.bf16.mxu0 0
  %1436 = vmatpush2.bf16.msra.mxu0 0
  %1437 = vmatprep.mubr.bf16.mxu0 0
  %1438 = vmatmul.mubr.bf16.gmra.mxu0 %v1042
  %v1439 = vpop.f32.mrf.mxu0
  %v1440 = vadd.f32 0.0, %v1439
  %v1441 = vpop.f32.mrf.mxu0
  %v1442 = vpop.f32.mrf.mxu0
  %v1443 = vadd.f32 0.0, %v1442
  %v1444 = vpop.f32.mrf.mxu0
  %1445 = vdwg.mxu0
  %s1446 = scalar_lea.vmem %s6, 12
  %v1447 = vld [vmem:[%s1446] sm:$0xf]
  %v1448 = vpack.c.bf16 %v1443, %v1440
  %v1450 = vsel %vm1164, %v1447, 0
  %1452 = vmatprep.subr.bf16.mxu0 0
  %1453 = vmatpush1.bf16.msra.mxu0 0
  %1454 = vmatprep.subr.bf16.mxu0 0
  %1455 = vmatpush1.bf16.msra.mxu0 0
  %1456 = vmatprep.subr.bf16.mxu0 0
  %1457 = vmatpush1.bf16.msra.mxu0 0
  %1458 = vmatprep.subr.bf16.mxu0 0
  %1459 = vmatpush1.bf16.msra.mxu0 0
  %1460 = vmatprep.subr.bf16.mxu0 0
  %1461 = vmatpush1.bf16.msra.mxu0 0
  %1462 = vmatprep.subr.bf16.mxu0 0
  %1463 = vmatpush1.bf16.msra.mxu0 0
  %1464 = vmatprep.subr.bf16.mxu0 0
  %1465 = vmatpush1.bf16.msra.mxu0 0
  %1466 = vmatprep.subr.bf16.mxu0 0
  %1467 = vmatpush1.bf16.msra.mxu0 %v1448
  %1468 = vmatprep.subr.bf16.mxu0 0
  %1469 = vmatpush2.bf16.msra.mxu0 0
  %1470 = vmatprep.subr.bf16.mxu0 0
  %1471 = vmatpush2.bf16.msra.mxu0 0
  %1472 = vmatprep.subr.bf16.mxu0 0
  %1473 = vmatpush2.bf16.msra.mxu0 0
  %1474 = vmatprep.subr.bf16.mxu0 0
  %1475 = vmatpush2.bf16.msra.mxu0 0
  %1476 = vmatprep.subr.bf16.mxu0 0
  %1477 = vmatpush2.bf16.msra.mxu0 0
  %1478 = vmatprep.subr.bf16.mxu0 0
  %1479 = vmatpush2.bf16.msra.mxu0 0
  %1480 = vmatprep.subr.bf16.mxu0 0
  %1481 = vmatpush2.bf16.msra.mxu0 0
  %1482 = vmatprep.subr.bf16.mxu0 0
  %1483 = vmatpush2.bf16.msra.mxu0 0
  %1484 = vmatprep.mubr.bf16.mxu0 0
  %1485 = vmatmul.mubr.bf16.gmra.mxu0 %v1450
  %v1486 = vpop.f32.mrf.mxu0
  %v1487 = vadd.f32 0.0, %v1486
  %v1488 = vpop.f32.mrf.mxu0
  %v1489 = vpop.f32.mrf.mxu0
  %v1490 = vpop.f32.mrf.mxu0
  %1491 = vdwg.mxu0
  %v1492 = vadd.f32 %v1371, %v1487
  %v1493 = vsel %vm581, %v1492, 0.0
  %v1494 = vrot.slane %v1493, 4
  %v1495 = vadd.f32 %v1493, %v1494
  %v1496 = vrot.slane %v1495, 2
  %v1497 = vadd.f32 %v1495, %v1496
  %v1498 = vrot.slane %v1497, 1
  %v1499 = vadd.f32 %v1497, %v1498
  %v1500 = vld [vmem:[%s9] sm:$0xff]
  %v1501 = vld [vmem:[%s9 + $0x8] sm:$0xff]
  %v1502 = vld [vmem:[%s9 + $0x10] sm:$0xff]
  %v1503 = vld [vmem:[%s9 + $0x18] sm:$0xff]
  %v1504 = vld [vmem:[%s9 + $0x20] sm:$0xff]
  %v1505 = vld [vmem:[%s9 + $0x28] sm:$0xff]
  %v1506 = vld [vmem:[%s9 + $0x30] sm:$0xff]
  %v1507 = vld [vmem:[%s9 + $0x38] sm:$0xff]
  %v1509 = vsel %vm581, %v1499, 0
  %1511 = vmatprep.subr.mxu0 0.0
  %1512 = vmatpush1.msra.mxu0 0.0
  %1513 = vmatprep.subr.mxu0 0.0
  %1514 = vmatpush1.msra.mxu0 0.0
  %1515 = vmatprep.subr.mxu0 0.0
  %1516 = vmatpush1.msra.mxu0 0.0
  %1517 = vmatprep.subr.mxu0 0.0
  %1518 = vmatpush1.msra.mxu0 0.0
  %1519 = vmatprep.subr.mxu0 0.0
  %1520 = vmatpush1.msra.mxu0 0.0
  %1521 = vmatprep.subr.mxu0 0.0
  %1522 = vmatpush1.msra.mxu0 0.0
  %1523 = vmatprep.subr.mxu0 0.0
  %1524 = vmatpush1.msra.mxu0 0.0
  %1525 = vmatprep.subr.mxu0 0.0
  %1526 = vmatpush1.msra.mxu0 0.0
  %1527 = vmatprep.subr.mxu0 0.0
  %1528 = vmatpush1.msra.mxu0 %v1507
  %1529 = vmatprep.subr.mxu0 0.0
  %1530 = vmatpush1.msra.mxu0 %v1506
  %1531 = vmatprep.subr.mxu0 0.0
  %1532 = vmatpush1.msra.mxu0 %v1505
  %1533 = vmatprep.subr.mxu0 0.0
  %1534 = vmatpush1.msra.mxu0 %v1504
  %1535 = vmatprep.subr.mxu0 0.0
  %1536 = vmatpush1.msra.mxu0 %v1503
  %1537 = vmatprep.subr.mxu0 0.0
  %1538 = vmatpush1.msra.mxu0 %v1502
  %1539 = vmatprep.subr.mxu0 0.0
  %1540 = vmatpush1.msra.mxu0 %v1501
  %1541 = vmatprep.subr.mxu0 0.0
  %1542 = vmatpush1.msra.mxu0 %v1500
  %1543 = vmatprep.subr.mxu0 0.0
  %1544 = vmatpush2.msra.mxu0 0.0
  %1545 = vmatprep.subr.mxu0 0.0
  %1546 = vmatpush2.msra.mxu0 0.0
  %1547 = vmatprep.subr.mxu0 0.0
  %1548 = vmatpush2.msra.mxu0 0.0
  %1549 = vmatprep.subr.mxu0 0.0
  %1550 = vmatpush2.msra.mxu0 0.0
  %1551 = vmatprep.subr.mxu0 0.0
  %1552 = vmatpush2.msra.mxu0 0.0
  %1553 = vmatprep.subr.mxu0 0.0
  %1554 = vmatpush2.msra.mxu0 0.0
  %1555 = vmatprep.subr.mxu0 0.0
  %1556 = vmatpush2.msra.mxu0 0.0
  %1557 = vmatprep.subr.mxu0 0.0
  %1558 = vmatpush2.msra.mxu0 0.0
  %1559 = vmatprep.subr.mxu0 0.0
  %1560 = vmatpush2.msra.mxu0 0.0
  %1561 = vmatprep.subr.mxu0 0.0
  %1562 = vmatpush2.msra.mxu0 0.0
  %1563 = vmatprep.subr.mxu0 0.0
  %1564 = vmatpush2.msra.mxu0 0.0
  %1565 = vmatprep.subr.mxu0 0.0
  %1566 = vmatpush2.msra.mxu0 0.0
  %1567 = vmatprep.subr.mxu0 0.0
  %1568 = vmatpush2.msra.mxu0 0.0
  %1569 = vmatprep.subr.mxu0 0.0
  %1570 = vmatpush2.msra.mxu0 0.0
  %1571 = vmatprep.subr.mxu0 0.0
  %1572 = vmatpush2.msra.mxu0 0.0
  %1573 = vmatprep.subr.mxu0 0.0
  %1574 = vmatpush2.msra.mxu0 0.0
  %1575 = vmatprep.mubr.f32.mxu0 0.0
  %1576 = vmatmul.mubr.f32.gmra.mxu0 %v1509
  %v1577 = vpop.f32.mrf.mxu0
  %v1578 = vadd.f32 0.0, %v1577
  %v1579 = vpop.f32.mrf.mxu0
  %1580 = vdwg.mxu0
  %v1581 = vmul.f32 %v1578, 0.03125
  %v1582 = vld [vmem:[%s10] sm:$0xff]
  %v1583 = vld [vmem:[%s10 + $0x8] sm:$0xff]
  %v1585 = vsel %vm1164, %v1581, 0
  %1587 = vmatprep.subr.mxu0 0.0
  %1588 = vmatpush1.msra.mxu0 0.0
  %1589 = vmatprep.subr.mxu0 0.0
  %1590 = vmatpush1.msra.mxu0 0.0
  %1591 = vmatprep.subr.mxu0 0.0
  %1592 = vmatpush1.msra.mxu0 0.0
  %1593 = vmatprep.subr.mxu0 0.0
  %1594 = vmatpush1.msra.mxu0 0.0
  %1595 = vmatprep.subr.mxu0 0.0
  %1596 = vmatpush1.msra.mxu0 0.0
  %1597 = vmatprep.subr.mxu0 0.0
  %1598 = vmatpush1.msra.mxu0 0.0
  %1599 = vmatprep.subr.mxu0 0.0
  %1600 = vmatpush1.msra.mxu0 0.0
  %1601 = vmatprep.subr.mxu0 0.0
  %1602 = vmatpush1.msra.mxu0 0.0
  %1603 = vmatprep.subr.mxu0 0.0
  %1604 = vmatpush1.msra.mxu0 0.0
  %1605 = vmatprep.subr.mxu0 0.0
  %1606 = vmatpush1.msra.mxu0 0.0
  %1607 = vmatprep.subr.mxu0 0.0
  %1608 = vmatpush1.msra.mxu0 0.0
  %1609 = vmatprep.subr.mxu0 0.0
  %1610 = vmatpush1.msra.mxu0 0.0
  %1611 = vmatprep.subr.mxu0 0.0
  %1612 = vmatpush1.msra.mxu0 0.0
  %1613 = vmatprep.subr.mxu0 0.0
  %1614 = vmatpush1.msra.mxu0 0.0
  %1615 = vmatprep.subr.mxu0 0.0
  %1616 = vmatpush1.msra.mxu0 %v1583
  %1617 = vmatprep.subr.mxu0 0.0
  %1618 = vmatpush1.msra.mxu0 %v1582
  %1619 = vmatprep.subr.mxu0 0.0
  %1620 = vmatpush2.msra.mxu0 0.0
  %1621 = vmatprep.subr.mxu0 0.0
  %1622 = vmatpush2.msra.mxu0 0.0
  %1623 = vmatprep.subr.mxu0 0.0
  %1624 = vmatpush2.msra.mxu0 0.0
  %1625 = vmatprep.subr.mxu0 0.0
  %1626 = vmatpush2.msra.mxu0 0.0
  %1627 = vmatprep.subr.mxu0 0.0
  %1628 = vmatpush2.msra.mxu0 0.0
  %1629 = vmatprep.subr.mxu0 0.0
  %1630 = vmatpush2.msra.mxu0 0.0
  %1631 = vmatprep.subr.mxu0 0.0
  %1632 = vmatpush2.msra.mxu0 0.0
  %1633 = vmatprep.subr.mxu0 0.0
  %1634 = vmatpush2.msra.mxu0 0.0
  %1635 = vmatprep.subr.mxu0 0.0
  %1636 = vmatpush2.msra.mxu0 0.0
  %1637 = vmatprep.subr.mxu0 0.0
  %1638 = vmatpush2.msra.mxu0 0.0
  %1639 = vmatprep.subr.mxu0 0.0
  %1640 = vmatpush2.msra.mxu0 0.0
  %1641 = vmatprep.subr.mxu0 0.0
  %1642 = vmatpush2.msra.mxu0 0.0
  %1643 = vmatprep.subr.mxu0 0.0
  %1644 = vmatpush2.msra.mxu0 0.0
  %1645 = vmatprep.subr.mxu0 0.0
  %1646 = vmatpush2.msra.mxu0 0.0
  %1647 = vmatprep.subr.mxu0 0.0
  %1648 = vmatpush2.msra.mxu0 0.0
  %1649 = vmatprep.subr.mxu0 0.0
  %1650 = vmatpush2.msra.mxu0 0.0
  %1651 = vmatprep.mubr.f32.mxu0 0.0
  %1652 = vmatmul.mubr.f32.gmra.mxu0 %v1585
  %v1653 = vpop.f32.mrf.mxu0
  %v1654 = vadd.f32 0.0, %v1653
  %v1655 = vpop.f32.mrf.mxu0
  %1656 = vdwg.mxu0
  %v1657 = vlaneseq
  %v1658 = vshrl.u32 %v1657, 7
  %v1659 = vsub.s32 0, %v1658
  %v1660 = vrot.slane %v1654, %v1659
  %v1661 = vsub.f32 %v1492, %v1660
  %v1662 = vmul.f32 %v1661, %v1661
  %v1663 = vsel %vm581, %v1662, 0.0
  %v1664 = vrot.slane %v1663, 4
  %v1665 = vadd.f32 %v1663, %v1664
  %v1666 = vrot.slane %v1665, 2
  %v1667 = vadd.f32 %v1665, %v1666
  %v1668 = vrot.slane %v1667, 1
  %v1669 = vadd.f32 %v1667, %v1668
  %v1671 = vsel %vm581, %v1669, 0
  %1673 = vmatprep.subr.mxu0 0.0
  %1674 = vmatpush1.msra.mxu0 0.0
  %1675 = vmatprep.subr.mxu0 0.0
  %1676 = vmatpush1.msra.mxu0 0.0
  %1677 = vmatprep.subr.mxu0 0.0
  %1678 = vmatpush1.msra.mxu0 0.0
  %1679 = vmatprep.subr.mxu0 0.0
  %1680 = vmatpush1.msra.mxu0 0.0
  %1681 = vmatprep.subr.mxu0 0.0
  %1682 = vmatpush1.msra.mxu0 0.0
  %1683 = vmatprep.subr.mxu0 0.0
  %1684 = vmatpush1.msra.mxu0 0.0
  %1685 = vmatprep.subr.mxu0 0.0
  %1686 = vmatpush1.msra.mxu0 0.0
  %1687 = vmatprep.subr.mxu0 0.0
  %1688 = vmatpush1.msra.mxu0 0.0
  %1689 = vmatprep.subr.mxu0 0.0
  %1690 = vmatpush1.msra.mxu0 %v1507
  %1691 = vmatprep.subr.mxu0 0.0
  %1692 = vmatpush1.msra.mxu0 %v1506
  %1693 = vmatprep.subr.mxu0 0.0
  %1694 = vmatpush1.msra.mxu0 %v1505
  %1695 = vmatprep.subr.mxu0 0.0
  %1696 = vmatpush1.msra.mxu0 %v1504
  %1697 = vmatprep.subr.mxu0 0.0
  %1698 = vmatpush1.msra.mxu0 %v1503
  %1699 = vmatprep.subr.mxu0 0.0
  %1700 = vmatpush1.msra.mxu0 %v1502
  %1701 = vmatprep.subr.mxu0 0.0
  %1702 = vmatpush1.msra.mxu0 %v1501
  %1703 = vmatprep.subr.mxu0 0.0
  %1704 = vmatpush1.msra.mxu0 %v1500
  %1705 = vmatprep.subr.mxu0 0.0
  %1706 = vmatpush2.msra.mxu0 0.0
  %1707 = vmatprep.subr.mxu0 0.0
  %1708 = vmatpush2.msra.mxu0 0.0
  %1709 = vmatprep.subr.mxu0 0.0
  %1710 = vmatpush2.msra.mxu0 0.0
  %1711 = vmatprep.subr.mxu0 0.0
  %1712 = vmatpush2.msra.mxu0 0.0
  %1713 = vmatprep.subr.mxu0 0.0
  %1714 = vmatpush2.msra.mxu0 0.0
  %1715 = vmatprep.subr.mxu0 0.0
  %1716 = vmatpush2.msra.mxu0 0.0
  %1717 = vmatprep.subr.mxu0 0.0
  %1718 = vmatpush2.msra.mxu0 0.0
  %1719 = vmatprep.subr.mxu0 0.0
  %1720 = vmatpush2.msra.mxu0 0.0
  %1721 = vmatprep.subr.mxu0 0.0
  %1722 = vmatpush2.msra.mxu0 0.0
  %1723 = vmatprep.subr.mxu0 0.0
  %1724 = vmatpush2.msra.mxu0 0.0
  %1725 = vmatprep.subr.mxu0 0.0
  %1726 = vmatpush2.msra.mxu0 0.0
  %1727 = vmatprep.subr.mxu0 0.0
  %1728 = vmatpush2.msra.mxu0 0.0
  %1729 = vmatprep.subr.mxu0 0.0
  %1730 = vmatpush2.msra.mxu0 0.0
  %1731 = vmatprep.subr.mxu0 0.0
  %1732 = vmatpush2.msra.mxu0 0.0
  %1733 = vmatprep.subr.mxu0 0.0
  %1734 = vmatpush2.msra.mxu0 0.0
  %1735 = vmatprep.subr.mxu0 0.0
  %1736 = vmatpush2.msra.mxu0 0.0
  %1737 = vmatprep.mubr.f32.mxu0 0.0
  %1738 = vmatmul.mubr.f32.gmra.mxu0 %v1671
  %v1739 = vpop.f32.mrf.mxu0
  %v1740 = vadd.f32 0.0, %v1739
  %v1741 = vpop.f32.mrf.mxu0
  %1742 = vdwg.mxu0
  %v1743 = vmul.f32 %v1740, 0.03125
  %v1744 = vld [vmem:[%s8] sm:$0x1]
  %v1745 = vadd.f32 %v1743, 1e-05
  %v1746 = vrsqrt.pop %v1745
  %v1747 = vmul.f32 %v1744, %v1746
  %v1749 = vsel %vm1164, %v1747, 0
  %1751 = vmatprep.subr.mxu0 0.0
  %1752 = vmatpush1.msra.mxu0 0.0
  %1753 = vmatprep.subr.mxu0 0.0
  %1754 = vmatpush1.msra.mxu0 0.0
  %1755 = vmatprep.subr.mxu0 0.0
  %1756 = vmatpush1.msra.mxu0 0.0
  %1757 = vmatprep.subr.mxu0 0.0
  %1758 = vmatpush1.msra.mxu0 0.0
  %1759 = vmatprep.subr.mxu0 0.0
  %1760 = vmatpush1.msra.mxu0 0.0
  %1761 = vmatprep.subr.mxu0 0.0
  %1762 = vmatpush1.msra.mxu0 0.0
  %1763 = vmatprep.subr.mxu0 0.0
  %1764 = vmatpush1.msra.mxu0 0.0
  %1765 = vmatprep.subr.mxu0 0.0
  %1766 = vmatpush1.msra.mxu0 0.0
  %1767 = vmatprep.subr.mxu0 0.0
  %1768 = vmatpush1.msra.mxu0 0.0
  %1769 = vmatprep.subr.mxu0 0.0
  %1770 = vmatpush1.msra.mxu0 0.0
  %1771 = vmatprep.subr.mxu0 0.0
  %1772 = vmatpush1.msra.mxu0 0.0
  %1773 = vmatprep.subr.mxu0 0.0
  %1774 = vmatpush1.msra.mxu0 0.0
  %1775 = vmatprep.subr.mxu0 0.0
  %1776 = vmatpush1.msra.mxu0 0.0
  %1777 = vmatprep.subr.mxu0 0.0
  %1778 = vmatpush1.msra.mxu0 0.0
  %1779 = vmatprep.subr.mxu0 0.0
  %1780 = vmatpush1.msra.mxu0 %v1583
  %1781 = vmatprep.subr.mxu0 0.0
  %1782 = vmatpush1.msra.mxu0 %v1582
  %1783 = vmatprep.subr.mxu0 0.0
  %1784 = vmatpush2.msra.mxu0 0.0
  %1785 = vmatprep.subr.mxu0 0.0
  %1786 = vmatpush2.msra.mxu0 0.0
  %1787 = vmatprep.subr.mxu0 0.0
  %1788 = vmatpush2.msra.mxu0 0.0
  %1789 = vmatprep.subr.mxu0 0.0
  %1790 = vmatpush2.msra.mxu0 0.0
  %1791 = vmatprep.subr.mxu0 0.0
  %1792 = vmatpush2.msra.mxu0 0.0
  %1793 = vmatprep.subr.mxu0 0.0
  %1794 = vmatpush2.msra.mxu0 0.0
  %1795 = vmatprep.subr.mxu0 0.0
  %1796 = vmatpush2.msra.mxu0 0.0
  %1797 = vmatprep.subr.mxu0 0.0
  %1798 = vmatpush2.msra.mxu0 0.0
  %1799 = vmatprep.subr.mxu0 0.0
  %1800 = vmatpush2.msra.mxu0 0.0
  %1801 = vmatprep.subr.mxu0 0.0
  %1802 = vmatpush2.msra.mxu0 0.0
  %1803 = vmatprep.subr.mxu0 0.0
  %1804 = vmatpush2.msra.mxu0 0.0
  %1805 = vmatprep.subr.mxu0 0.0
  %1806 = vmatpush2.msra.mxu0 0.0
  %1807 = vmatprep.subr.mxu0 0.0
  %1808 = vmatpush2.msra.mxu0 0.0
  %1809 = vmatprep.subr.mxu0 0.0
  %1810 = vmatpush2.msra.mxu0 0.0
  %1811 = vmatprep.subr.mxu0 0.0
  %1812 = vmatpush2.msra.mxu0 0.0
  %1813 = vmatprep.subr.mxu0 0.0
  %1814 = vmatpush2.msra.mxu0 0.0
  %1815 = vmatprep.mubr.f32.mxu0 0.0
  %1816 = vmatmul.mubr.f32.gmra.mxu0 %v1749
  %v1817 = vpop.f32.mrf.mxu0
  %v1818 = vadd.f32 0.0, %v1817
  %v1819 = vpop.f32.mrf.mxu0
  %1820 = vdwg.mxu0
  %v1821 = vlaneseq
  %v1822 = vshrl.u32 %v1821, 7
  %v1823 = vsub.s32 0, %v1822
  %v1824 = vrot.slane %v1818, %v1823
  %v1825 = vmul.f32 %v1661, %v1824
  %v1826 = vld [vmem:[%s8 + $0x1] sm:$0x1]
  %v1828 = vsel %vm1164, %v1826, 0
  %1830 = vmatprep.subr.mxu0 0.0
  %1831 = vmatpush1.msra.mxu0 0.0
  %1832 = vmatprep.subr.mxu0 0.0
  %1833 = vmatpush1.msra.mxu0 0.0
  %1834 = vmatprep.subr.mxu0 0.0
  %1835 = vmatpush1.msra.mxu0 0.0
  %1836 = vmatprep.subr.mxu0 0.0
  %1837 = vmatpush1.msra.mxu0 0.0
  %1838 = vmatprep.subr.mxu0 0.0
  %1839 = vmatpush1.msra.mxu0 0.0
  %1840 = vmatprep.subr.mxu0 0.0
  %1841 = vmatpush1.msra.mxu0 0.0
  %1842 = vmatprep.subr.mxu0 0.0
  %1843 = vmatpush1.msra.mxu0 0.0
  %1844 = vmatprep.subr.mxu0 0.0
  %1845 = vmatpush1.msra.mxu0 0.0
  %1846 = vmatprep.subr.mxu0 0.0
  %1847 = vmatpush1.msra.mxu0 0.0
  %1848 = vmatprep.subr.mxu0 0.0
  %1849 = vmatpush1.msra.mxu0 0.0
  %1850 = vmatprep.subr.mxu0 0.0
  %1851 = vmatpush1.msra.mxu0 0.0
  %1852 = vmatprep.subr.mxu0 0.0
  %1853 = vmatpush1.msra.mxu0 0.0
  %1854 = vmatprep.subr.mxu0 0.0
  %1855 = vmatpush1.msra.mxu0 0.0
  %1856 = vmatprep.subr.mxu0 0.0
  %1857 = vmatpush1.msra.mxu0 0.0
  %1858 = vmatprep.subr.mxu0 0.0
  %1859 = vmatpush1.msra.mxu0 %v1583
  %1860 = vmatprep.subr.mxu0 0.0
  %1861 = vmatpush1.msra.mxu0 %v1582
  %1862 = vmatprep.subr.mxu0 0.0
  %1863 = vmatpush2.msra.mxu0 0.0
  %1864 = vmatprep.subr.mxu0 0.0
  %1865 = vmatpush2.msra.mxu0 0.0
  %1866 = vmatprep.subr.mxu0 0.0
  %1867 = vmatpush2.msra.mxu0 0.0
  %1868 = vmatprep.subr.mxu0 0.0
  %1869 = vmatpush2.msra.mxu0 0.0
  %1870 = vmatprep.subr.mxu0 0.0
  %1871 = vmatpush2.msra.mxu0 0.0
  %1872 = vmatprep.subr.mxu0 0.0
  %1873 = vmatpush2.msra.mxu0 0.0
  %1874 = vmatprep.subr.mxu0 0.0
  %1875 = vmatpush2.msra.mxu0 0.0
  %1876 = vmatprep.subr.mxu0 0.0
  %1877 = vmatpush2.msra.mxu0 0.0
  %1878 = vmatprep.subr.mxu0 0.0
  %1879 = vmatpush2.msra.mxu0 0.0
  %1880 = vmatprep.subr.mxu0 0.0
  %1881 = vmatpush2.msra.mxu0 0.0
  %1882 = vmatprep.subr.mxu0 0.0
  %1883 = vmatpush2.msra.mxu0 0.0
  %1884 = vmatprep.subr.mxu0 0.0
  %1885 = vmatpush2.msra.mxu0 0.0
  %1886 = vmatprep.subr.mxu0 0.0
  %1887 = vmatpush2.msra.mxu0 0.0
  %1888 = vmatprep.subr.mxu0 0.0
  %1889 = vmatpush2.msra.mxu0 0.0
  %1890 = vmatprep.subr.mxu0 0.0
  %1891 = vmatpush2.msra.mxu0 0.0
  %1892 = vmatprep.subr.mxu0 0.0
  %1893 = vmatpush2.msra.mxu0 0.0
  %1894 = vmatprep.mubr.f32.mxu0 0.0
  %1895 = vmatmul.mubr.f32.gmra.mxu0 %v1828
  %v1896 = vpop.f32.mrf.mxu0
  %v1897 = vadd.f32 0.0, %v1896
  %v1898 = vpop.f32.mrf.mxu0
  %1899 = vdwg.mxu0
  %v1900 = vlaneseq
  %v1901 = vshrl.u32 %v1900, 7
  %v1902 = vsub.s32 0, %v1901
  %v1903 = vrot.slane %v1897, %v1902
  %v1904 = vadd.f32 %v1825, %v1903
  %vm1905 = vcmp.gt.f32.partialorder %v1904, 0.0
  %v1906 = vmul.f32 %v1904, 0.2
  %v1907 = vsel %vm1905, %v1904, %v1906
  %v1908 = vpack.c.bf16 %v1907, %v1907
  %v1909 = vld [vmem:[%s12] sm:$0xf]
  %v1910 = vld [vmem:[%s12 + $0x4] sm:$0xf]
  %v1911 = vld [vmem:[%s12 + $0x8] sm:$0xf]
  %v1912 = vld [vmem:[%s12 + $0xc] sm:$0xf]
  %v1913 = vld [vmem:[%s12 + $0x10] sm:$0xf]
  %v1914 = vld [vmem:[%s12 + $0x14] sm:$0xf]
  %v1915 = vld [vmem:[%s12 + $0x18] sm:$0xf]
  %v1916 = vld [vmem:[%s12 + $0x1c] sm:$0xf]
  %v1925 = vunpack.c.l.b16 %v1909
  %v1926 = vunpack.c.l.b16 %v1910
  %v1927 = vunpack.c.l.b16 %v1911
  %v1928 = vunpack.c.l.b16 %v1912
  %v1929 = vunpack.c.l.b16 %v1913
  %v1930 = vunpack.c.l.b16 %v1914
  %v1931 = vunpack.c.l.b16 %v1915
  %v1932 = vunpack.c.l.b16 %v1916
  %v1933 = vpack.c.b16 %v1926, %v1925
  %v1934 = vpack.c.b16 %v1928, %v1927
  %v1935 = vpack.c.b16 %v1930, %v1929
  %v1936 = vpack.c.b16 %v1932, %v1931
  %v1942 = vsel %vm581, %v1908, 0
  %1944 = vmatprep.subr.bf16.mxu0 0
  %1945 = vmatpush1.bf16.msra.mxu0 0
  %1946 = vmatprep.subr.bf16.mxu0 0
  %1947 = vmatpush1.bf16.msra.mxu0 0
  %1948 = vmatprep.subr.bf16.mxu0 0
  %1949 = vmatpush1.bf16.msra.mxu0 0
  %1950 = vmatprep.subr.bf16.mxu0 0
  %1951 = vmatpush1.bf16.msra.mxu0 0
  %1952 = vmatprep.subr.bf16.mxu0 0
  %1953 = vmatpush1.bf16.msra.mxu0 %v1936
  %1954 = vmatprep.subr.bf16.mxu0 0
  %1955 = vmatpush1.bf16.msra.mxu0 %v1935
  %1956 = vmatprep.subr.bf16.mxu0 0
  %1957 = vmatpush1.bf16.msra.mxu0 %v1934
  %1958 = vmatprep.subr.bf16.mxu0 0
  %1959 = vmatpush1.bf16.msra.mxu0 %v1933
  %1960 = vmatprep.subr.bf16.mxu0 0
  %1961 = vmatpush2.bf16.msra.mxu0 0
  %1962 = vmatprep.subr.bf16.mxu0 0
  %1963 = vmatpush2.bf16.msra.mxu0 0
  %1964 = vmatprep.subr.bf16.mxu0 0
  %1965 = vmatpush2.bf16.msra.mxu0 0
  %1966 = vmatprep.subr.bf16.mxu0 0
  %1967 = vmatpush2.bf16.msra.mxu0 0
  %1968 = vmatprep.subr.bf16.mxu0 0
  %1969 = vmatpush2.bf16.msra.mxu0 0
  %1970 = vmatprep.subr.bf16.mxu0 0
  %1971 = vmatpush2.bf16.msra.mxu0 0
  %1972 = vmatprep.subr.bf16.mxu0 0
  %1973 = vmatpush2.bf16.msra.mxu0 0
  %1974 = vmatprep.subr.bf16.mxu0 0
  %1975 = vmatpush2.bf16.msra.mxu0 0
  %1976 = vmatprep.mubr.bf16.mxu0 0
  %1977 = vmatmul.mubr.bf16.gmra.mxu0 %v1942
  %v1978 = vpop.f32.mrf.mxu0
  %v1979 = vadd.f32 0.0, %v1978
  %v1980 = vpop.f32.mrf.mxu0
  %v1981 = vpop.f32.mrf.mxu0
  %v1982 = vpop.f32.mrf.mxu0
  %1983 = vdwg.mxu0
  %v1984 = vld [vmem:[%s11] sm:$0x3]
  %v1985 = vpack.c.bf16 %v1979, %v1979
  %s1986 = scalar_lea.vmem %s12, 32
  %v1987 = vld [vmem:[%s1986] sm:$0xf]
  %v1988 = vld [vmem:[%s1986 + $0x4] sm:$0xf]
  %v1989 = vld [vmem:[%s1986 + $0x8] sm:$0xf]
  %v1990 = vld [vmem:[%s1986 + $0xc] sm:$0xf]
  %v1991 = vld [vmem:[%s1986 + $0x10] sm:$0xf]
  %v1992 = vld [vmem:[%s1986 + $0x14] sm:$0xf]
  %v1993 = vld [vmem:[%s1986 + $0x18] sm:$0xf]
  %v1994 = vld [vmem:[%s1986 + $0x1c] sm:$0xf]
  %v2003 = vunpack.c.l.b16 %v1987
  %v2004 = vunpack.c.l.b16 %v1988
  %v2005 = vunpack.c.l.b16 %v1989
  %v2006 = vunpack.c.l.b16 %v1990
  %v2007 = vunpack.c.l.b16 %v1991
  %v2008 = vunpack.c.l.b16 %v1992
  %v2009 = vunpack.c.l.b16 %v1993
  %v2010 = vunpack.c.l.b16 %v1994
  %v2011 = vpack.c.b16 %v2004, %v2003
  %v2012 = vpack.c.b16 %v2006, %v2005
  %v2013 = vpack.c.b16 %v2008, %v2007
  %v2014 = vpack.c.b16 %v2010, %v2009
  %2019 = vmatprep.subr.bf16.mxu0 0
  %2020 = vmatpush1.bf16.msra.mxu0 0
  %2021 = vmatprep.subr.bf16.mxu0 0
  %2022 = vmatpush1.bf16.msra.mxu0 0
  %2023 = vmatprep.subr.bf16.mxu0 0
  %2024 = vmatpush1.bf16.msra.mxu0 0
  %2025 = vmatprep.subr.bf16.mxu0 0
  %2026 = vmatpush1.bf16.msra.mxu0 0
  %2027 = vmatprep.subr.bf16.mxu0 0
  %2028 = vmatpush1.bf16.msra.mxu0 %v2014
  %2029 = vmatprep.subr.bf16.mxu0 0
  %2030 = vmatpush1.bf16.msra.mxu0 %v2013
  %2031 = vmatprep.subr.bf16.mxu0 0
  %2032 = vmatpush1.bf16.msra.mxu0 %v2012
  %2033 = vmatprep.subr.bf16.mxu0 0
  %2034 = vmatpush1.bf16.msra.mxu0 %v2011
  %2035 = vmatprep.subr.bf16.mxu0 0
  %2036 = vmatpush2.bf16.msra.mxu0 0
  %2037 = vmatprep.subr.bf16.mxu0 0
  %2038 = vmatpush2.bf16.msra.mxu0 0
  %2039 = vmatprep.subr.bf16.mxu0 0
  %2040 = vmatpush2.bf16.msra.mxu0 0
  %2041 = vmatprep.subr.bf16.mxu0 0
  %2042 = vmatpush2.bf16.msra.mxu0 0
  %2043 = vmatprep.subr.bf16.mxu0 0
  %2044 = vmatpush2.bf16.msra.mxu0 0
  %2045 = vmatprep.subr.bf16.mxu0 0
  %2046 = vmatpush2.bf16.msra.mxu0 0
  %2047 = vmatprep.subr.bf16.mxu0 0
  %2048 = vmatpush2.bf16.msra.mxu0 0
  %2049 = vmatprep.subr.bf16.mxu0 0
  %2050 = vmatpush2.bf16.msra.mxu0 0
  %2051 = vmatprep.mubr.bf16.mxu0 0
  %2052 = vmatmul.mubr.bf16.gmra.mxu0 %v1942
  %v2053 = vpop.f32.mrf.mxu0
  %v2054 = vadd.f32 0.0, %v2053
  %v2055 = vpop.f32.mrf.mxu0
  %v2056 = vpop.f32.mrf.mxu0
  %v2057 = vpop.f32.mrf.mxu0
  %2058 = vdwg.mxu0
  %s2059 = scalar_lea.vmem %s11, 2
  %v2060 = vld [vmem:[%s2059] sm:$0x3]
  %v2061 = vpack.c.bf16 %v2054, %v2054
  %v2063 = vsel %vm674, %v2060, 0
  %vm2065 = vcmask 1043456
  %v2067 = vsel %vm2065, %v2061, 0
  %2069 = vmatprep.subr.bf16.mxu0 0
  %2070 = vmatpush1.bf16.msra.mxu0 0
  %2071 = vmatprep.subr.bf16.mxu0 0
  %2072 = vmatpush1.bf16.msra.mxu0 0
  %2073 = vmatprep.subr.bf16.mxu0 0
  %2074 = vmatpush1.bf16.msra.mxu0 0
  %2075 = vmatprep.subr.bf16.mxu0 0
  %2076 = vmatpush1.bf16.msra.mxu0 0
  %2077 = vmatprep.subr.bf16.mxu0 0
  %2078 = vmatpush1.bf16.msra.mxu0 0
  %2079 = vmatprep.subr.bf16.mxu0 0
  %2080 = vmatpush1.bf16.msra.mxu0 0
  %2081 = vmatprep.subr.bf16.mxu0 0
  %2082 = vmatpush1.bf16.msra.mxu0 0
  %2083 = vmatprep.subr.bf16.mxu0 0
  %2084 = vmatpush1.bf16.msra.mxu0 %v2067
  %2085 = vmatprep.subr.bf16.mxu0 0
  %2086 = vmatpush2.bf16.msra.mxu0 0
  %2087 = vmatprep.subr.bf16.mxu0 0
  %2088 = vmatpush2.bf16.msra.mxu0 0
  %2089 = vmatprep.subr.bf16.mxu0 0
  %2090 = vmatpush2.bf16.msra.mxu0 0
  %2091 = vmatprep.subr.bf16.mxu0 0
  %2092 = vmatpush2.bf16.msra.mxu0 0
  %2093 = vmatprep.subr.bf16.mxu0 0
  %2094 = vmatpush2.bf16.msra.mxu0 0
  %2095 = vmatprep.subr.bf16.mxu0 0
  %2096 = vmatpush2.bf16.msra.mxu0 0
  %2097 = vmatprep.subr.bf16.mxu0 0
  %2098 = vmatpush2.bf16.msra.mxu0 0
  %2099 = vmatprep.subr.bf16.mxu0 0
  %2100 = vmatpush2.bf16.msra.mxu0 0
  %2101 = vmatprep.mubr.bf16.mxu0 0
  %2102 = vmatmul.mubr.bf16.gmra.mxu0 %v2063
  %v2103 = vpop.f32.mrf.mxu0
  %v2104 = vadd.f32 0.0, %v2103
  %v2105 = vpop.f32.mrf.mxu0
  %v2106 = vpop.f32.mrf.mxu0
  %v2107 = vpop.f32.mrf.mxu0
  %2108 = vdwg.mxu0
  %v2110 = vsel %vm674, %v1984, 0
  %v2113 = vsel %vm2065, %v1985, 0
  %2115 = vmatprep.subr.bf16.mxu0 0
  %2116 = vmatpush1.bf16.msra.mxu0 0
  %2117 = vmatprep.subr.bf16.mxu0 0
  %2118 = vmatpush1.bf16.msra.mxu0 0
  %2119 = vmatprep.subr.bf16.mxu0 0
  %2120 = vmatpush1.bf16.msra.mxu0 0
  %2121 = vmatprep.subr.bf16.mxu0 0
  %2122 = vmatpush1.bf16.msra.mxu0 0
  %2123 = vmatprep.subr.bf16.mxu0 0
  %2124 = vmatpush1.bf16.msra.mxu0 0
  %2125 = vmatprep.subr.bf16.mxu0 0
  %2126 = vmatpush1.bf16.msra.mxu0 0
  %2127 = vmatprep.subr.bf16.mxu0 0
  %2128 = vmatpush1.bf16.msra.mxu0 0
  %2129 = vmatprep.subr.bf16.mxu0 0
  %2130 = vmatpush1.bf16.msra.mxu0 %v2113
  %2131 = vmatprep.subr.bf16.mxu0 0
  %2132 = vmatpush2.bf16.msra.mxu0 0
  %2133 = vmatprep.subr.bf16.mxu0 0
  %2134 = vmatpush2.bf16.msra.mxu0 0
  %2135 = vmatprep.subr.bf16.mxu0 0
  %2136 = vmatpush2.bf16.msra.mxu0 0
  %2137 = vmatprep.subr.bf16.mxu0 0
  %2138 = vmatpush2.bf16.msra.mxu0 0
  %2139 = vmatprep.subr.bf16.mxu0 0
  %2140 = vmatpush2.bf16.msra.mxu0 0
  %2141 = vmatprep.subr.bf16.mxu0 0
  %2142 = vmatpush2.bf16.msra.mxu0 0
  %2143 = vmatprep.subr.bf16.mxu0 0
  %2144 = vmatpush2.bf16.msra.mxu0 0
  %2145 = vmatprep.subr.bf16.mxu0 0
  %2146 = vmatpush2.bf16.msra.mxu0 0
  %2147 = vmatprep.mubr.bf16.mxu0 0
  %2148 = vmatmul.mubr.bf16.gmra.mxu0 %v2110
  %v2149 = vpop.f32.mrf.mxu0
  %v2150 = vadd.f32 %v2104, %v2149
  %v2151 = vpop.f32.mrf.mxu0
  %v2152 = vpop.f32.mrf.mxu0
  %v2153 = vpop.f32.mrf.mxu0
  %2154 = vdwg.mxu0
  %s2155 = scalar_lea.vmem %s12, 64
  %v2156 = vld [vmem:[%s2155] sm:$0xf]
  %v2157 = vld [vmem:[%s2155 + $0x4] sm:$0xf]
  %v2158 = vld [vmem:[%s2155 + $0x8] sm:$0xf]
  %v2159 = vld [vmem:[%s2155 + $0xc] sm:$0xf]
  %v2160 = vld [vmem:[%s2155 + $0x10] sm:$0xf]
  %v2161 = vld [vmem:[%s2155 + $0x14] sm:$0xf]
  %v2162 = vld [vmem:[%s2155 + $0x18] sm:$0xf]
  %v2163 = vld [vmem:[%s2155 + $0x1c] sm:$0xf]
  %v2172 = vunpack.c.l.b16 %v2156
  %v2173 = vunpack.c.l.b16 %v2157
  %v2174 = vunpack.c.l.b16 %v2158
  %v2175 = vunpack.c.l.b16 %v2159
  %v2176 = vunpack.c.l.b16 %v2160
  %v2177 = vunpack.c.l.b16 %v2161
  %v2178 = vunpack.c.l.b16 %v2162
  %v2179 = vunpack.c.l.b16 %v2163
  %v2180 = vpack.c.b16 %v2173, %v2172
  %v2181 = vpack.c.b16 %v2175, %v2174
  %v2182 = vpack.c.b16 %v2177, %v2176
  %v2183 = vpack.c.b16 %v2179, %v2178
  %2188 = vmatprep.subr.bf16.mxu0 0
  %2189 = vmatpush1.bf16.msra.mxu0 0
  %2190 = vmatprep.subr.bf16.mxu0 0
  %2191 = vmatpush1.bf16.msra.mxu0 0
  %2192 = vmatprep.subr.bf16.mxu0 0
  %2193 = vmatpush1.bf16.msra.mxu0 0
  %2194 = vmatprep.subr.bf16.mxu0 0
  %2195 = vmatpush1.bf16.msra.mxu0 0
  %2196 = vmatprep.subr.bf16.mxu0 0
  %2197 = vmatpush1.bf16.msra.mxu0 %v2183
  %2198 = vmatprep.subr.bf16.mxu0 0
  %2199 = vmatpush1.bf16.msra.mxu0 %v2182
  %2200 = vmatprep.subr.bf16.mxu0 0
  %2201 = vmatpush1.bf16.msra.mxu0 %v2181
  %2202 = vmatprep.subr.bf16.mxu0 0
  %2203 = vmatpush1.bf16.msra.mxu0 %v2180
  %2204 = vmatprep.subr.bf16.mxu0 0
  %2205 = vmatpush2.bf16.msra.mxu0 0
  %2206 = vmatprep.subr.bf16.mxu0 0
  %2207 = vmatpush2.bf16.msra.mxu0 0
  %2208 = vmatprep.subr.bf16.mxu0 0
  %2209 = vmatpush2.bf16.msra.mxu0 0
  %2210 = vmatprep.subr.bf16.mxu0 0
  %2211 = vmatpush2.bf16.msra.mxu0 0
  %2212 = vmatprep.subr.bf16.mxu0 0
  %2213 = vmatpush2.bf16.msra.mxu0 0
  %2214 = vmatprep.subr.bf16.mxu0 0
  %2215 = vmatpush2.bf16.msra.mxu0 0
  %2216 = vmatprep.subr.bf16.mxu0 0
  %2217 = vmatpush2.bf16.msra.mxu0 0
  %2218 = vmatprep.subr.bf16.mxu0 0
  %2219 = vmatpush2.bf16.msra.mxu0 0
  %2220 = vmatprep.mubr.bf16.mxu0 0
  %2221 = vmatmul.mubr.bf16.gmra.mxu0 %v1942
  %v2222 = vpop.f32.mrf.mxu0
  %v2223 = vadd.f32 0.0, %v2222
  %v2224 = vpop.f32.mrf.mxu0
  %v2225 = vpop.f32.mrf.mxu0
  %v2226 = vpop.f32.mrf.mxu0
  %2227 = vdwg.mxu0
  %s2228 = scalar_lea.vmem %s11, 4
  %v2229 = vld [vmem:[%s2228] sm:$0x3]
  %v2230 = vpack.c.bf16 %v2223, %v2223
  %v2232 = vsel %vm674, %v2229, 0
  %v2235 = vsel %vm2065, %v2230, 0
  %2237 = vmatprep.subr.bf16.mxu0 0
  %2238 = vmatpush1.bf16.msra.mxu0 0
  %2239 = vmatprep.subr.bf16.mxu0 0
  %2240 = vmatpush1.bf16.msra.mxu0 0
  %2241 = vmatprep.subr.bf16.mxu0 0
  %2242 = vmatpush1.bf16.msra.mxu0 0
  %2243 = vmatprep.subr.bf16.mxu0 0
  %2244 = vmatpush1.bf16.msra.mxu0 0
  %2245 = vmatprep.subr.bf16.mxu0 0
  %2246 = vmatpush1.bf16.msra.mxu0 0
  %2247 = vmatprep.subr.bf16.mxu0 0
  %2248 = vmatpush1.bf16.msra.mxu0 0
  %2249 = vmatprep.subr.bf16.mxu0 0
  %2250 = vmatpush1.bf16.msra.mxu0 0
  %2251 = vmatprep.subr.bf16.mxu0 0
  %2252 = vmatpush1.bf16.msra.mxu0 %v2235
  %2253 = vmatprep.subr.bf16.mxu0 0
  %2254 = vmatpush2.bf16.msra.mxu0 0
  %2255 = vmatprep.subr.bf16.mxu0 0
  %2256 = vmatpush2.bf16.msra.mxu0 0
  %2257 = vmatprep.subr.bf16.mxu0 0
  %2258 = vmatpush2.bf16.msra.mxu0 0
  %2259 = vmatprep.subr.bf16.mxu0 0
  %2260 = vmatpush2.bf16.msra.mxu0 0
  %2261 = vmatprep.subr.bf16.mxu0 0
  %2262 = vmatpush2.bf16.msra.mxu0 0
  %2263 = vmatprep.subr.bf16.mxu0 0
  %2264 = vmatpush2.bf16.msra.mxu0 0
  %2265 = vmatprep.subr.bf16.mxu0 0
  %2266 = vmatpush2.bf16.msra.mxu0 0
  %2267 = vmatprep.subr.bf16.mxu0 0
  %2268 = vmatpush2.bf16.msra.mxu0 0
  %2269 = vmatprep.mubr.bf16.mxu0 0
  %2270 = vmatmul.mubr.bf16.gmra.mxu0 %v2232
  %v2271 = vpop.f32.mrf.mxu0
  %v2272 = vadd.f32 0.0, %v2271
  %v2273 = vpop.f32.mrf.mxu0
  %v2274 = vpop.f32.mrf.mxu0
  %v2275 = vpop.f32.mrf.mxu0
  %2276 = vdwg.mxu0
  %v2277 = vadd.f32 %v2150, %v2272
  %s2278 = scalar_lea.vmem %s12, 96
  %v2279 = vld [vmem:[%s2278] sm:$0xf]
  %v2280 = vld [vmem:[%s2278 + $0x4] sm:$0xf]
  %v2281 = vld [vmem:[%s2278 + $0x8] sm:$0xf]
  %v2282 = vld [vmem:[%s2278 + $0xc] sm:$0xf]
  %v2283 = vld [vmem:[%s2278 + $0x10] sm:$0xf]
  %v2284 = vld [vmem:[%s2278 + $0x14] sm:$0xf]
  %v2285 = vld [vmem:[%s2278 + $0x18] sm:$0xf]
  %v2286 = vld [vmem:[%s2278 + $0x1c] sm:$0xf]
  %v2295 = vunpack.c.l.b16 %v2279
  %v2296 = vunpack.c.l.b16 %v2280
  %v2297 = vunpack.c.l.b16 %v2281
  %v2298 = vunpack.c.l.b16 %v2282
  %v2299 = vunpack.c.l.b16 %v2283
  %v2300 = vunpack.c.l.b16 %v2284
  %v2301 = vunpack.c.l.b16 %v2285
  %v2302 = vunpack.c.l.b16 %v2286
  %v2303 = vpack.c.b16 %v2296, %v2295
  %v2304 = vpack.c.b16 %v2298, %v2297
  %v2305 = vpack.c.b16 %v2300, %v2299
  %v2306 = vpack.c.b16 %v2302, %v2301
  %2311 = vmatprep.subr.bf16.mxu0 0
  %2312 = vmatpush1.bf16.msra.mxu0 0
  %2313 = vmatprep.subr.bf16.mxu0 0
  %2314 = vmatpush1.bf16.msra.mxu0 0
  %2315 = vmatprep.subr.bf16.mxu0 0
  %2316 = vmatpush1.bf16.msra.mxu0 0
  %2317 = vmatprep.subr.bf16.mxu0 0
  %2318 = vmatpush1.bf16.msra.mxu0 0
  %2319 = vmatprep.subr.bf16.mxu0 0
  %2320 = vmatpush1.bf16.msra.mxu0 %v2306
  %2321 = vmatprep.subr.bf16.mxu0 0
  %2322 = vmatpush1.bf16.msra.mxu0 %v2305
  %2323 = vmatprep.subr.bf16.mxu0 0
  %2324 = vmatpush1.bf16.msra.mxu0 %v2304
  %2325 = vmatprep.subr.bf16.mxu0 0
  %2326 = vmatpush1.bf16.msra.mxu0 %v2303
  %2327 = vmatprep.subr.bf16.mxu0 0
  %2328 = vmatpush2.bf16.msra.mxu0 0
  %2329 = vmatprep.subr.bf16.mxu0 0
  %2330 = vmatpush2.bf16.msra.mxu0 0
  %2331 = vmatprep.subr.bf16.mxu0 0
  %2332 = vmatpush2.bf16.msra.mxu0 0
  %2333 = vmatprep.subr.bf16.mxu0 0
  %2334 = vmatpush2.bf16.msra.mxu0 0
  %2335 = vmatprep.subr.bf16.mxu0 0
  %2336 = vmatpush2.bf16.msra.mxu0 0
  %2337 = vmatprep.subr.bf16.mxu0 0
  %2338 = vmatpush2.bf16.msra.mxu0 0
  %2339 = vmatprep.subr.bf16.mxu0 0
  %2340 = vmatpush2.bf16.msra.mxu0 0
  %2341 = vmatprep.subr.bf16.mxu0 0
  %2342 = vmatpush2.bf16.msra.mxu0 0
  %2343 = vmatprep.mubr.bf16.mxu0 0
  %2344 = vmatmul.mubr.bf16.gmra.mxu0 %v1942
  %v2345 = vpop.f32.mrf.mxu0
  %v2346 = vadd.f32 0.0, %v2345
  %v2347 = vpop.f32.mrf.mxu0
  %v2348 = vpop.f32.mrf.mxu0
  %v2349 = vpop.f32.mrf.mxu0
  %2350 = vdwg.mxu0
  %s2351 = scalar_lea.vmem %s11, 6
  %v2352 = vld [vmem:[%s2351] sm:$0x3]
  %v2353 = vpack.c.bf16 %v2346, %v2346
  %v2355 = vsel %vm674, %v2352, 0
  %v2358 = vsel %vm2065, %v2353, 0
  %2360 = vmatprep.subr.bf16.mxu0 0
  %2361 = vmatpush1.bf16.msra.mxu0 0
  %2362 = vmatprep.subr.bf16.mxu0 0
  %2363 = vmatpush1.bf16.msra.mxu0 0
  %2364 = vmatprep.subr.bf16.mxu0 0
  %2365 = vmatpush1.bf16.msra.mxu0 0
  %2366 = vmatprep.subr.bf16.mxu0 0
  %2367 = vmatpush1.bf16.msra.mxu0 0
  %2368 = vmatprep.subr.bf16.mxu0 0
  %2369 = vmatpush1.bf16.msra.mxu0 0
  %2370 = vmatprep.subr.bf16.mxu0 0
  %2371 = vmatpush1.bf16.msra.mxu0 0
  %2372 = vmatprep.subr.bf16.mxu0 0
  %2373 = vmatpush1.bf16.msra.mxu0 0
  %2374 = vmatprep.subr.bf16.mxu0 0
  %2375 = vmatpush1.bf16.msra.mxu0 %v2358
  %2376 = vmatprep.subr.bf16.mxu0 0
  %2377 = vmatpush2.bf16.msra.mxu0 0
  %2378 = vmatprep.subr.bf16.mxu0 0
  %2379 = vmatpush2.bf16.msra.mxu0 0
  %2380 = vmatprep.subr.bf16.mxu0 0
  %2381 = vmatpush2.bf16.msra.mxu0 0
  %2382 = vmatprep.subr.bf16.mxu0 0
  %2383 = vmatpush2.bf16.msra.mxu0 0
  %2384 = vmatprep.subr.bf16.mxu0 0
  %2385 = vmatpush2.bf16.msra.mxu0 0
  %2386 = vmatprep.subr.bf16.mxu0 0
  %2387 = vmatpush2.bf16.msra.mxu0 0
  %2388 = vmatprep.subr.bf16.mxu0 0
  %2389 = vmatpush2.bf16.msra.mxu0 0
  %2390 = vmatprep.subr.bf16.mxu0 0
  %2391 = vmatpush2.bf16.msra.mxu0 0
  %2392 = vmatprep.mubr.bf16.mxu0 0
  %2393 = vmatmul.mubr.bf16.gmra.mxu0 %v2355
  %v2394 = vpop.f32.mrf.mxu0
  %v2395 = vadd.f32 0.0, %v2394
  %v2396 = vpop.f32.mrf.mxu0
  %v2397 = vpop.f32.mrf.mxu0
  %v2398 = vpop.f32.mrf.mxu0
  %2399 = vdwg.mxu0
  %v2400 = vadd.f32 %v2277, %v2395
  %vm2401 = vcmask 519168
  %2402 = vst.msk [vmem:[%s13] sm:$0xf] %vm2401, %v2400
  // Predicated region
  $region54: #{enc_forward.1} parent=0 // pred_check
    _
  $region55: #{enc_forward.1} parent=0 // pred_check_branch
    %2404 = sbr.rel (0) target = $region57
  $region56: #{enc_forward.1} parent=0 // pred_region
    _
  $region57: #{enc_forward.1} parent=0 // pred_fallthru
    _
  // Predicated region
  $region58: #{enc_forward.1} parent=0 // pred_check
    _
  $region59: #{enc_forward.1} parent=0 // pred_check_branch
    %2406 = sbr.rel (0) target = $region61
  $region60: #{enc_forward.1} parent=0 // pred_region
    _
  $region61: #{enc_forward.1} parent=0 // pred_fallthru
    _

</llo_original>
